<compile_context>
chip_gen: v7x
topology: tpu7x:2x2x1
jax: 0.10.0
libtpu: 0.0.40
codegen_flags: <defaults>
</compile_context>

<pallas_src>
import jax
import jax.numpy as jnp
import numpy as np
from jax.experimental import pallas as pl
from jax.experimental.pallas import tpu as pltpu


def _round_up(x, m):
    return (x + m - 1) // m * m


# ---------------------------------------------------------------------------
# Math helpers (pure jnp; used both inside the kernel and in the reference)
# ---------------------------------------------------------------------------
def _gru_from_gates(gx, gh, h, D):
    """PyTorch GRUCell update from precomputed gate projections.

    gx / gh are [B, >=3D] with gate layout [r | z | n | pad] at stride D.
    Expects (optionally) the r/z hidden biases pre-folded into gx and only the
    n-gate hidden bias left inside gh (so that n = tanh(gx_n + r*(Whn h + b_hn))).
    """
    r = jax.nn.sigmoid(gx[:, 0:D] + gh[:, 0:D])
    z = jax.nn.sigmoid(gx[:, D:2 * D] + gh[:, D:2 * D])
    n = jnp.tanh(gx[:, 2 * D:3 * D] + r * gh[:, 2 * D:3 * D])
    return (1.0 - z) * n + z * h


def _layernorm(h, gamma, beta, eps=1e-5):
    mu = jnp.mean(h, axis=-1, keepdims=True)
    var = jnp.mean(jnp.square(h - mu), axis=-1, keepdims=True)
    return (h - mu) * jax.lax.rsqrt(var + eps) * gamma + beta


# ---------------------------------------------------------------------------
# Pallas kernel: 2-layer GRU reducer over the mailbox seq + LayerNorm + fc
# ---------------------------------------------------------------------------
def gru_reducer_classify_kernel(hseq_ref,
                                wih1_ref, whh1_ref, bx1_ref, bh1_ref,
                                wih2_ref, whh2_ref, bx2_ref, bh2_ref,
                                ln_g_ref, ln_b_ref,
                                wfc1_ref, wfc2_ref, bfc_ref,
                                out_ref,
                                gx_ref):
    T, Bt, D = hseq_ref.shape
    P = wih1_ref.shape[1]                      # round_up(3*D, 128), packed gates

    # ---- Hoisted layer-0 input projection: one big MXU matmul over all t, with
    # ---- the input biases (and the r/z hidden biases) pre-folded in bx1. ----
    x_all = hseq_ref[...].reshape(T * Bt, D)
    gx_all = jnp.dot(x_all, wih1_ref[...],
                     preferred_element_type=jnp.float32) + bx1_ref[...]
    gx_ref[...] = gx_all.reshape(T, Bt, P).astype(gx_ref.dtype)

    # Hoist the [1,P] -> [Bt,P] bias broadcasts out of the time loop (JAX does
    # not CSE broadcast_in_dim; re-broadcasting each step wastes VPU work).
    bh1 = jnp.broadcast_to(bh1_ref[...], (Bt, P))
    bx2 = jnp.broadcast_to(bx2_ref[...], (Bt, P))
    bh2 = jnp.broadcast_to(bh2_ref[...], (Bt, P))

    def step(t, carry):
        h1, h2 = carry
        gx1 = gx_ref[t].astype(jnp.float32)
        gh1 = jnp.dot(h1.astype(whh1_ref.dtype), whh1_ref[...],
                      preferred_element_type=jnp.float32) + bh1
        h1 = _gru_from_gates(gx1, gh1, h1, D)

        gx2 = jnp.dot(h1.astype(wih2_ref.dtype), wih2_ref[...],
                      preferred_element_type=jnp.float32) + bx2
        gh2 = jnp.dot(h2.astype(whh2_ref.dtype), whh2_ref[...],
                      preferred_element_type=jnp.float32) + bh2
        h2 = _gru_from_gates(gx2, gh2, h2, D)
        return (h1, h2)

    h0 = jnp.zeros((Bt, D), jnp.float32)
    # fori_loop (not a static Python unroll) bounds live ranges; fully unroll
    # small trip counts so the LLO scheduler still sees the whole body.
    h1, h2 = jax.lax.fori_loop(0, T, step, (h0, h0), unroll=(T <= 8))

    # ---- LayerNorm + classification for both GRU layers, packed into one
    # ---- lane-dense [Bt, round_up(2C,128)] store: layer-0 logits occupy lanes
    # ---- [0,C) (wfc1), layer-1 logits occupy lanes [C,2C) (wfc2, pre-shifted).
    ln_g, ln_b = ln_g_ref[...], ln_b_ref[...]
    logits = (jnp.dot(_layernorm(h1, ln_g, ln_b).astype(wfc1_ref.dtype),
                      wfc1_ref[...], preferred_element_type=jnp.float32)
              + jnp.dot(_layernorm(h2, ln_g, ln_b).astype(wfc2_ref.dtype),
                        wfc2_ref[...], preferred_element_type=jnp.float32)
              + bfc_ref[...])
    out_ref[...] = logits.astype(out_ref.dtype)


# ---------------------------------------------------------------------------
# Wrapper = GTEProgramClassification.forward (single block, first_layer path)
# ---------------------------------------------------------------------------
def _num_tensorcores_per_chip():
    try:
        kind = jax.devices()[0].device_kind.lower()
    except Exception:
        return 1
    return 2 if ("v7" in kind or "7x" in kind) else 1


def gte_program_classification_forward(params, token_ids, edge_src, *,
                                        block_b=512,
                                        matmul_dtype=jnp.bfloat16):
    emb = params["embedding"]                              # [V, D]
    D = emb.shape[1]
    C = params["fc_w_t"].shape[1]
    mm = matmul_dtype
    mm_bytes = jnp.dtype(mm).itemsize

    # GTEConv first-layer glue: embedding lookup + subtoken mean (feat_drop p=0).
    feat_src = jnp.mean(emb[token_ids], axis=1).astype(mm)  # [N_src, D], matmul dtype

    # DGL copy_u message + per-dst mailbox (fixed in-degree L): gather directly in
    # time-major layout (transpose the tiny index array, not the big tensor) and
    # drop the unused msg[:, -1, :] ("current_input") column up front.
    hseq_t = feat_src[edge_src[:, :-1].T]                  # [T, N_dst, D]
    T, n_dst, _ = hseq_t.shape

    P3 = _round_up(3 * D, 128)                             # packed-gate lane width
    CP2 = _round_up(2 * C, 128)                            # packed 2-layer logits width

    # ---- Block size along the (parallel) destination-node axis, VMEM-budgeted. ----
    def _buf_bytes(bt):
        return (2 * T * bt * D * mm_bytes                  # hseq block (double-buffered)
                + T * bt * P3 * mm_bytes                   # gx scratch
                + 2 * bt * CP2 * 4                         # out block (double-buffered)
                + 8 * bt * P3 * 4)                         # in-flight gate temps / biases
    budget = 20 << 20                                      # dynamic-buffer budget, all gens
    bt = min(_round_up(block_b, 8), _round_up(max(n_dst, 8), 8))
    while bt > 8 and _buf_bytes(bt) > budget:
        bt = max(8, _round_up(bt // 2, 8))

    n_tc = _num_tensorcores_per_chip()
    if n_tc > 1 and n_dst > 8:                             # give both v7x TCs work
        bt = min(bt, _round_up((n_dst + 1) // 2, 8))
    n_pad = _round_up(n_dst, bt)
    if n_tc > 1 and (n_pad // bt) > 1 and (n_pad // bt) % 2 == 1:
        n_pad += bt                                        # even grid-step parity on v7x

    if n_pad != n_dst:
        hseq_t = jnp.pad(hseq_t, ((0, 0), (0, n_pad - n_dst), (0, 0)))

    # ---- Weight packing: whole 3D gate block padded once to P3 (no per-gate
    # ---- 128-lane padding); r/z hidden biases folded into the input bias. ----
    def pad_last(a, width):
        return jnp.pad(a, [(0, 0)] * (a.ndim - 1) + [(0, width - a.shape[-1])])

    def fold_gru_biases(b_ih, b_hh):
        bx = jnp.concatenate([b_ih[:, :2 * D] + b_hh[:, :2 * D],   # r,z fully folded
                              b_ih[:, 2 * D:]], axis=-1)           # n keeps only b_in
        bh = jnp.concatenate([jnp.zeros_like(b_hh[:, :2 * D]),
                              b_hh[:, 2 * D:]], axis=-1)           # b_hn stays inside r*(.)
        return pad_last(bx, P3), pad_last(bh, P3)

    bx1, bh1 = fold_gru_biases(params["gru_b_ih_l0"], params["gru_b_hh_l0"])
    bx2, bh2 = fold_gru_biases(params["gru_b_ih_l1"], params["gru_b_hh_l1"])

    wfc, bfc = params["fc_w_t"], params["fc_b"]            # [D, C], [1, C]
    weight_args = (
        pad_last(params["gru_w_ih_l0_t"], P3).astype(mm),
        pad_last(params["gru_w_hh_l0_t"], P3).astype(mm),
        bx1, bh1,                                           # biases stay f32
        pad_last(params["gru_w_ih_l1_t"], P3).astype(mm),
        pad_last(params["gru_w_hh_l1_t"], P3).astype(mm),
        bx2, bh2,
        params["ln_gamma"], params["ln_beta"],
        jnp.pad(wfc, ((0, 0), (0, CP2 - C))).astype(mm),         # layer-0 cols [0,C)
        jnp.pad(wfc, ((0, 0), (C, CP2 - 2 * C))).astype(mm),    # layer-1 cols [C,2C)
        pad_last(jnp.concatenate([bfc, bfc], axis=-1), CP2),
    )

    weight_bytes = sum(int(np.prod(w.shape)) * jnp.dtype(w.dtype).itemsize
                       for w in weight_args)
    vmem_limit = int(min(max(_buf_bytes(bt) + weight_bytes + (8 << 20), 32 << 20),
                         48 << 20))                         # < v7x 64 MiB physical VMEM

    # Weights/biases: whole-array VMEM residents (no per-step double-buffering).
    vmem_full = pl.BlockSpec(memory_space=pltpu.MemorySpace.VMEM)
    in_specs = [pl.BlockSpec((T, bt, D), lambda i: (0, i, 0))]
    in_specs += [vmem_full] * len(weight_args)

    out = pl.pallas_call(
        gru_reducer_classify_kernel,
        out_shape=jax.ShapeDtypeStruct((n_pad, CP2), jnp.float32),
        grid_spec=pltpu.PrefetchScalarGridSpec(
            num_scalar_prefetch=0,
            grid=(n_pad // bt,),
            in_specs=in_specs,
            out_specs=pl.BlockSpec((bt, CP2), lambda i: (i, 0)),
            scratch_shapes=[pltpu.VMEM((T, bt, P3), mm)],   # hoisted gx1, matmul dtype
        ),
        compiler_params=pltpu.CompilerParams(
            dimension_semantics=("parallel",),              # megacore-shardable on v7x
            vmem_limit_bytes=vmem_limit),
    )(hseq_t, *weight_args)

    # Unpack: drop row padding, split the lane-packed logits, stack to the
    # module's [num_gru_layers=2, N_dst, C] output.
    out = out[:n_dst]
    out_feature = jnp.stack([out[:, :C], out[:, C:2 * C]], axis=0)
    return out_feature, None                                 # (out_feature, attn=None)


# ---------------------------------------------------------------------------
# Pure-JAX reference (same math, no Pallas) for correctness check
# ---------------------------------------------------------------------------
def reference_forward(params, token_ids, edge_src):
    emb = params["embedding"]
    D = emb.shape[1]
    feat_src = jnp.mean(emb[token_ids], axis=1)
    mailbox = feat_src[edge_src]
    hseq = mailbox[:, :-1, :]
    n_dst, T, _ = hseq.shape

    def cell(x, h, w_ih_t, w_hh_t, b_ih, b_hh):
        gx = x @ w_ih_t + b_ih
        gh = h @ w_hh_t + b_hh
        return _gru_from_gates(gx, gh, h, D)

    h1 = jnp.zeros((n_dst, D), jnp.float32)
    h2 = jnp.zeros((n_dst, D), jnp.float32)
    for t in range(T):
        x = hseq[:, t, :]
        h1 = cell(x, h1, params["gru_w_ih_l0_t"], params["gru_w_hh_l0_t"],
                  params["gru_b_ih_l0"], params["gru_b_hh_l0"])
        h2 = cell(h1, h2, params["gru_w_ih_l1_t"], params["gru_w_hh_l1_t"],
                  params["gru_b_ih_l1"], params["gru_b_hh_l1"])
    g, b = params["ln_gamma"], params["ln_beta"]
    out1 = _layernorm(h1, g, b) @ params["fc_w_t"] + params["fc_b"]
    out2 = _layernorm(h2, g, b) @ params["fc_w_t"] + params["fc_b"]
    return jnp.stack([out1, out2], axis=0)


# ---------------------------------------------------------------------------
# Deterministic parameter init (shapes from the module __init__)
# ---------------------------------------------------------------------------
def init_params(key, vocab_size, hidden_dim, n_classes):
    D = hidden_dim
    ks = jax.random.split(key, 12)
    emb_std = (2.0 / D) ** 0.5                              # kaiming_normal_
    k_gru = 1.0 / np.sqrt(D)                                # nn.GRU reset_parameters
    k_fc = 1.0 / np.sqrt(D)                                 # nn.Linear default

    def u(k, shape, lim):
        return jax.random.uniform(k, shape, jnp.float32, -lim, lim)

    return {
        "embedding": emb_std * jax.random.normal(ks[0], (vocab_size, D), jnp.float32),
        # torch weight_ih_l{k} is [3D, D]; stored transposed -> [D, 3D]
        "gru_w_ih_l0_t": u(ks[1], (D, 3 * D), k_gru),
        "gru_w_hh_l0_t": u(ks[2], (D, 3 * D), k_gru),
        "gru_b_ih_l0":   u(ks[3], (1, 3 * D), k_gru),
        "gru_b_hh_l0":   u(ks[4], (1, 3 * D), k_gru),
        "gru_w_ih_l1_t": u(ks[5], (D, 3 * D), k_gru),
        "gru_w_hh_l1_t": u(ks[6], (D, 3 * D), k_gru),
        "gru_b_ih_l1":   u(ks[7], (1, 3 * D), k_gru),
        "gru_b_hh_l1":   u(ks[8], (1, 3 * D), k_gru),
        "ln_gamma": jnp.ones((1, D), jnp.float32),
        "ln_beta":  jnp.zeros((1, D), jnp.float32),
        # torch fc_classify.weight is [C, D]; stored transposed -> [D, C]
        "fc_w_t": u(ks[9], (D, n_classes), k_fc),
        "fc_b":   u(ks[10], (1, n_classes), k_fc),
    }


if __name__ == "__main__":
    HIDDEN_DIM = 32       # hidden_dim
    VOCAB = 50            # vocab_size
    SUBTOK = 3            # subtoken=True -> mean over 3 subtokens
    N_CLASSES = 8
    N_SRC, N_DST, IN_DEG = 16, 20, 5   # single block, fixed in-degree 5

    key = jax.random.PRNGKey(0)
    kp, kt, ke = jax.random.split(key, 3)
    params = init_params(kp, VOCAB, HIDDEN_DIM, N_CLASSES)
    token_ids = jax.random.randint(kt, (N_SRC, SUBTOK), 0, VOCAB, dtype=jnp.int32)
    edge_src = jax.random.randint(ke, (N_DST, IN_DEG), 0, N_SRC, dtype=jnp.int32)

    ref = reference_forward(params, token_ids, edge_src)

    # 1) f32 MXU path with the default (large) block size: tight numerical check.
    out_f32, _ = gte_program_classification_forward(
        params, token_ids, edge_src, matmul_dtype=jnp.float32)
    out_f32 = jax.block_until_ready(out_f32)
    assert out_f32.shape == (2, N_DST, N_CLASSES)   # [num_gru_layers, N_dst, C]
    np.testing.assert_allclose(np.asarray(out_f32), np.asarray(ref),
                               rtol=1e-4, atol=1e-4)

    # 2) Default bf16 MXU path with block_b=8 so the multi-step grid + row
    #    padding are exercised at toy sizes; looser tolerance since inputs,
    #    weights and the gx scratch are bf16 (the tight check is (1) above).
    out_bf16, _ = gte_program_classification_forward(
        params, token_ids, edge_src, block_b=8)
    out_bf16 = jax.block_until_ready(out_bf16)
    assert out_bf16.shape == (2, N_DST, N_CLASSES)
    np.testing.assert_allclose(np.asarray(out_bf16), np.asarray(ref),
                               rtol=1e-1, atol=1e-1)

    print("KERNEL_OK")
</pallas_src>

<mosaic_0001>
module attributes {stable_mosaic.version = 11 : i64} {
  func.func @gru_reducer_classify_kernel(%arg0: i32, %arg1: memref<4x24x32xf32, #tpu.memory_space<vmem>>, %arg2: memref<32x128xf32, #tpu.memory_space<vmem>>, %arg3: memref<32x128xf32, #tpu.memory_space<vmem>>, %arg4: memref<1x128xf32, #tpu.memory_space<vmem>>, %arg5: memref<1x128xf32, #tpu.memory_space<vmem>>, %arg6: memref<32x128xf32, #tpu.memory_space<vmem>>, %arg7: memref<32x128xf32, #tpu.memory_space<vmem>>, %arg8: memref<1x128xf32, #tpu.memory_space<vmem>>, %arg9: memref<1x128xf32, #tpu.memory_space<vmem>>, %arg10: memref<1x32xf32, #tpu.memory_space<vmem>>, %arg11: memref<1x32xf32, #tpu.memory_space<vmem>>, %arg12: memref<32x128xf32, #tpu.memory_space<vmem>>, %arg13: memref<32x128xf32, #tpu.memory_space<vmem>>, %arg14: memref<1x128xf32, #tpu.memory_space<vmem>>, %arg15: memref<24x128xf32, #tpu.memory_space<vmem>>, %arg16: memref<4x24x128xf32, #tpu.memory_space<vmem>>) attributes {dimension_semantics = [#tpu.dimension_semantics<parallel>], iteration_bounds = array<i64: 1>, scalar_prefetch = 0 : i64, scratch_operands = 1 : i64, tpu.core_type = #tpu.core_type<tc>, window_params = [{transform_indices = @transform_0, window_bounds = array<i64: 4, 24, 32>}, {pipeline_mode = #tpu.pipeline_mode<synchronous>, transform_indices = @transform_1, window_bounds = array<i64: 32, 128>}, {pipeline_mode = #tpu.pipeline_mode<synchronous>, transform_indices = @transform_2, window_bounds = array<i64: 32, 128>}, {pipeline_mode = #tpu.pipeline_mode<synchronous>, transform_indices = @transform_3, window_bounds = array<i64: 1, 128>}, {pipeline_mode = #tpu.pipeline_mode<synchronous>, transform_indices = @transform_4, window_bounds = array<i64: 1, 128>}, {pipeline_mode = #tpu.pipeline_mode<synchronous>, transform_indices = @transform_5, window_bounds = array<i64: 32, 128>}, {pipeline_mode = #tpu.pipeline_mode<synchronous>, transform_indices = @transform_6, window_bounds = array<i64: 32, 128>}, {pipeline_mode = #tpu.pipeline_mode<synchronous>, transform_indices = @transform_7, window_bounds = array<i64: 1, 128>}, {pipeline_mode = #tpu.pipeline_mode<synchronous>, transform_indices = @transform_8, window_bounds = array<i64: 1, 128>}, {pipeline_mode = #tpu.pipeline_mode<synchronous>, transform_indices = @transform_9, window_bounds = array<i64: 1, 32>}, {pipeline_mode = #tpu.pipeline_mode<synchronous>, transform_indices = @transform_10, window_bounds = array<i64: 1, 32>}, {pipeline_mode = #tpu.pipeline_mode<synchronous>, transform_indices = @transform_11, window_bounds = array<i64: 32, 128>}, {pipeline_mode = #tpu.pipeline_mode<synchronous>, transform_indices = @transform_12, window_bounds = array<i64: 32, 128>}, {pipeline_mode = #tpu.pipeline_mode<synchronous>, transform_indices = @transform_13, window_bounds = array<i64: 1, 128>}, {transform_indices = @transform_14, window_bounds = array<i64: 24, 128>}]} {
    %c0 = arith.constant 0 : index
    %c0_0 = arith.constant 0 : index
    %c0_1 = arith.constant 0 : index
    %0 = vector.load %arg1[%c0, %c0_0, %c0_1] : memref<4x24x32xf32, #tpu.memory_space<vmem>>, vector<4x24x32xf32>
    %1 = vector.shape_cast %0 : vector<4x24x32xf32> to vector<96x32xf32>
    %c0_2 = arith.constant 0 : index
    %c0_3 = arith.constant 0 : index
    %2 = vector.load %arg2[%c0_2, %c0_3] : memref<32x128xf32, #tpu.memory_space<vmem>>, vector<32x128xf32>
    %cst = arith.constant dense<0.000000e+00> : vector<96x128xf32>
    %3 = tpu.matmul %1, %2, %cst {dimension_numbers = #tpu.dot_dimension_numbers<[1], [0], [0], [1], [0, 0, 1, 1], [], []>} : vector<96x32xf32>, vector<32x128xf32>, vector<96x128xf32> -> vector<96x128xf32>
    %c0_4 = arith.constant 0 : index
    %c0_5 = arith.constant 0 : index
    %4 = vector.load %arg4[%c0_4, %c0_5] : memref<1x128xf32, #tpu.memory_space<vmem>>, vector<1x128xf32>
    %5 = vector.broadcast %4 : vector<1x128xf32> to vector<96x128xf32>
    %6 = arith.addf %3, %5 : vector<96x128xf32>
    %7 = vector.shape_cast %6 : vector<96x128xf32> to vector<4x24x128xf32>
    %c0_6 = arith.constant 0 : index
    %c0_7 = arith.constant 0 : index
    %c0_8 = arith.constant 0 : index
    %8 = vector.load %arg16[%c0_6, %c0_7, %c0_8] : memref<4x24x128xf32, #tpu.memory_space<vmem>>, vector<4x24x128xf32>
    tpu.vector_store %arg16[%c0_6, %c0_7, %c0_8], %7 {strides = array<i32>} : memref<4x24x128xf32, #tpu.memory_space<vmem>>, vector<4x24x128xf32>,
    %c0_9 = arith.constant 0 : index
    %c0_10 = arith.constant 0 : index
    %9 = vector.load %arg5[%c0_9, %c0_10] : memref<1x128xf32, #tpu.memory_space<vmem>>, vector<1x128xf32>
    %10 = vector.shape_cast %9 : vector<1x128xf32> to vector<1x128xf32>
    %11 = vector.broadcast %10 : vector<1x128xf32> to vector<24x128xf32>
    %c0_11 = arith.constant 0 : index
    %c0_12 = arith.constant 0 : index
    %12 = vector.load %arg8[%c0_11, %c0_12] : memref<1x128xf32, #tpu.memory_space<vmem>>, vector<1x128xf32>
    %13 = vector.shape_cast %12 : vector<1x128xf32> to vector<1x128xf32>
    %14 = vector.broadcast %13 : vector<1x128xf32> to vector<24x128xf32>
    %c0_13 = arith.constant 0 : index
    %c0_14 = arith.constant 0 : index
    %15 = vector.load %arg9[%c0_13, %c0_14] : memref<1x128xf32, #tpu.memory_space<vmem>>, vector<1x128xf32>
    %16 = vector.shape_cast %15 : vector<1x128xf32> to vector<1x128xf32>
    %17 = vector.broadcast %16 : vector<1x128xf32> to vector<24x128xf32>
    %cst_15 = arith.constant 0.000000e+00 : f32
    %18 = vector.broadcast %cst_15 : f32 to vector<24x32xf32>
    %c0_i32 = arith.constant 0 : i32
    %19 = arith.index_cast %c0_i32 : i32 to index
    %c0_16 = arith.constant 0 : index
    %c0_17 = arith.constant 0 : index
    %20 = vector.load %arg16[%19, %c0_16, %c0_17] : memref<4x24x128xf32, #tpu.memory_space<vmem>>, vector<1x24x128xf32>
    %21 = vector.shape_cast %20 : vector<1x24x128xf32> to vector<24x128xf32>
    %c0_18 = arith.constant 0 : index
    %c0_19 = arith.constant 0 : index
    %22 = vector.load %arg3[%c0_18, %c0_19] : memref<32x128xf32, #tpu.memory_space<vmem>>, vector<32x128xf32>
    %cst_20 = arith.constant dense<0.000000e+00> : vector<24x128xf32>
    %23 = tpu.matmul %18, %22, %cst_20 {dimension_numbers = #tpu.dot_dimension_numbers<[1], [0], [0], [1], [0, 0, 1, 1], [], []>} : vector<24x32xf32>, vector<32x128xf32>, vector<24x128xf32> -> vector<24x128xf32>
    %24 = arith.addf %23, %11 : vector<24x128xf32>
    %25 = vector.extract_strided_slice %21 {offsets = [0, 0], sizes = [24, 32], strides = [1, 1]} : vector<24x128xf32> to vector<24x32xf32>
    %26 = vector.extract_strided_slice %24 {offsets = [0, 0], sizes = [24, 32], strides = [1, 1]} : vector<24x128xf32> to vector<24x32xf32>
    %27 = arith.addf %25, %26 : vector<24x32xf32>
    %28 = arith.negf %27 : vector<24x32xf32>
    %29 = math.exp %28 : vector<24x32xf32>
    %cst_21 = arith.constant 1.000000e+00 : f32
    %30 = vector.broadcast %cst_21 : f32 to vector<24x32xf32>
    %31 = arith.addf %30, %29 : vector<24x32xf32>
    %32 = arith.divf %30, %31 : vector<24x32xf32>
    %33 = vector.extract_strided_slice %21 {offsets = [0, 32], sizes = [24, 32], strides = [1, 1]} : vector<24x128xf32> to vector<24x32xf32>
    %34 = vector.extract_strided_slice %24 {offsets = [0, 32], sizes = [24, 32], strides = [1, 1]} : vector<24x128xf32> to vector<24x32xf32>
    %35 = arith.addf %33, %34 : vector<24x32xf32>
    %36 = arith.negf %35 : vector<24x32xf32>
    %37 = math.exp %36 : vector<24x32xf32>
    %cst_22 = arith.constant 1.000000e+00 : f32
    %38 = vector.broadcast %cst_22 : f32 to vector<24x32xf32>
    %39 = arith.addf %38, %37 : vector<24x32xf32>
    %40 = arith.divf %38, %39 : vector<24x32xf32>
    %41 = vector.extract_strided_slice %21 {offsets = [0, 64], sizes = [24, 32], strides = [1, 1]} : vector<24x128xf32> to vector<24x32xf32>
    %42 = vector.extract_strided_slice %24 {offsets = [0, 64], sizes = [24, 32], strides = [1, 1]} : vector<24x128xf32> to vector<24x32xf32>
    %43 = arith.mulf %32, %42 : vector<24x32xf32>
    %44 = arith.addf %41, %43 : vector<24x32xf32>
    %45 = math.tanh %44 : vector<24x32xf32>
    %cst_23 = arith.constant 1.000000e+00 : f32
    %46 = vector.broadcast %cst_23 : f32 to vector<24x32xf32>
    %47 = arith.subf %46, %40 : vector<24x32xf32>
    %48 = arith.mulf %47, %45 : vector<24x32xf32>
    %49 = arith.mulf %40, %18 : vector<24x32xf32>
    %50 = arith.addf %48, %49 : vector<24x32xf32>
    %c0_24 = arith.constant 0 : index
    %c0_25 = arith.constant 0 : index
    %51 = vector.load %arg6[%c0_24, %c0_25] : memref<32x128xf32, #tpu.memory_space<vmem>>, vector<32x128xf32>
    %cst_26 = arith.constant dense<0.000000e+00> : vector<24x128xf32>
    %52 = tpu.matmul %50, %51, %cst_26 {dimension_numbers = #tpu.dot_dimension_numbers<[1], [0], [0], [1], [0, 0, 1, 1], [], []>} : vector<24x32xf32>, vector<32x128xf32>, vector<24x128xf32> -> vector<24x128xf32>
    %53 = arith.addf %52, %14 : vector<24x128xf32>
    %c0_27 = arith.constant 0 : index
    %c0_28 = arith.constant 0 : index
    %54 = vector.load %arg7[%c0_27, %c0_28] : memref<32x128xf32, #tpu.memory_space<vmem>>, vector<32x128xf32>
    %cst_29 = arith.constant dense<0.000000e+00> : vector<24x128xf32>
    %55 = tpu.matmul %18, %54, %cst_29 {dimension_numbers = #tpu.dot_dimension_numbers<[1], [0], [0], [1], [0, 0, 1, 1], [], []>} : vector<24x32xf32>, vector<32x128xf32>, vector<24x128xf32> -> vector<24x128xf32>
    %56 = arith.addf %55, %17 : vector<24x128xf32>
    %57 = vector.extract_strided_slice %53 {offsets = [0, 0], sizes = [24, 32], strides = [1, 1]} : vector<24x128xf32> to vector<24x32xf32>
    %58 = vector.extract_strided_slice %56 {offsets = [0, 0], sizes = [24, 32], strides = [1, 1]} : vector<24x128xf32> to vector<24x32xf32>
    %59 = arith.addf %57, %58 : vector<24x32xf32>
    %60 = arith.negf %59 : vector<24x32xf32>
    %61 = math.exp %60 : vector<24x32xf32>
    %cst_30 = arith.constant 1.000000e+00 : f32
    %62 = vector.broadcast %cst_30 : f32 to vector<24x32xf32>
    %63 = arith.addf %62, %61 : vector<24x32xf32>
    %64 = arith.divf %62, %63 : vector<24x32xf32>
    %65 = vector.extract_strided_slice %53 {offsets = [0, 32], sizes = [24, 32], strides = [1, 1]} : vector<24x128xf32> to vector<24x32xf32>
    %66 = vector.extract_strided_slice %56 {offsets = [0, 32], sizes = [24, 32], strides = [1, 1]} : vector<24x128xf32> to vector<24x32xf32>
    %67 = arith.addf %65, %66 : vector<24x32xf32>
    %68 = arith.negf %67 : vector<24x32xf32>
    %69 = math.exp %68 : vector<24x32xf32>
    %cst_31 = arith.constant 1.000000e+00 : f32
    %70 = vector.broadcast %cst_31 : f32 to vector<24x32xf32>
    %71 = arith.addf %70, %69 : vector<24x32xf32>
    %72 = arith.divf %70, %71 : vector<24x32xf32>
    %73 = vector.extract_strided_slice %53 {offsets = [0, 64], sizes = [24, 32], strides = [1, 1]} : vector<24x128xf32> to vector<24x32xf32>
    %74 = vector.extract_strided_slice %56 {offsets = [0, 64], sizes = [24, 32], strides = [1, 1]} : vector<24x128xf32> to vector<24x32xf32>
    %75 = arith.mulf %64, %74 : vector<24x32xf32>
    %76 = arith.addf %73, %75 : vector<24x32xf32>
    %77 = math.tanh %76 : vector<24x32xf32>
    %cst_32 = arith.constant 1.000000e+00 : f32
    %78 = vector.broadcast %cst_32 : f32 to vector<24x32xf32>
    %79 = arith.subf %78, %72 : vector<24x32xf32>
    %80 = arith.mulf %79, %77 : vector<24x32xf32>
    %81 = arith.mulf %72, %18 : vector<24x32xf32>
    %82 = arith.addf %80, %81 : vector<24x32xf32>
    %c1_i32 = arith.constant 1 : i32
    %83 = arith.index_cast %c1_i32 : i32 to index
    %c0_33 = arith.constant 0 : index
    %c0_34 = arith.constant 0 : index
    %84 = vector.load %arg16[%83, %c0_33, %c0_34] : memref<4x24x128xf32, #tpu.memory_space<vmem>>, vector<1x24x128xf32>
    %85 = vector.shape_cast %84 : vector<1x24x128xf32> to vector<24x128xf32>
    %c0_35 = arith.constant 0 : index
    %c0_36 = arith.constant 0 : index
    %86 = vector.load %arg3[%c0_35, %c0_36] : memref<32x128xf32, #tpu.memory_space<vmem>>, vector<32x128xf32>
    %cst_37 = arith.constant dense<0.000000e+00> : vector<24x128xf32>
    %87 = tpu.matmul %50, %86, %cst_37 {dimension_numbers = #tpu.dot_dimension_numbers<[1], [0], [0], [1], [0, 0, 1, 1], [], []>} : vector<24x32xf32>, vector<32x128xf32>, vector<24x128xf32> -> vector<24x128xf32>
    %88 = arith.addf %87, %11 : vector<24x128xf32>
    %89 = vector.extract_strided_slice %85 {offsets = [0, 0], sizes = [24, 32], strides = [1, 1]} : vector<24x128xf32> to vector<24x32xf32>
    %90 = vector.extract_strided_slice %88 {offsets = [0, 0], sizes = [24, 32], strides = [1, 1]} : vector<24x128xf32> to vector<24x32xf32>
    %91 = arith.addf %89, %90 : vector<24x32xf32>
    %92 = arith.negf %91 : vector<24x32xf32>
    %93 = math.exp %92 : vector<24x32xf32>
    %cst_38 = arith.constant 1.000000e+00 : f32
    %94 = vector.broadcast %cst_38 : f32 to vector<24x32xf32>
    %95 = arith.addf %94, %93 : vector<24x32xf32>
    %96 = arith.divf %94, %95 : vector<24x32xf32>
    %97 = vector.extract_strided_slice %85 {offsets = [0, 32], sizes = [24, 32], strides = [1, 1]} : vector<24x128xf32> to vector<24x32xf32>
    %98 = vector.extract_strided_slice %88 {offsets = [0, 32], sizes = [24, 32], strides = [1, 1]} : vector<24x128xf32> to vector<24x32xf32>
    %99 = arith.addf %97, %98 : vector<24x32xf32>
    %100 = arith.negf %99 : vector<24x32xf32>
    %101 = math.exp %100 : vector<24x32xf32>
    %cst_39 = arith.constant 1.000000e+00 : f32
    %102 = vector.broadcast %cst_39 : f32 to vector<24x32xf32>
    %103 = arith.addf %102, %101 : vector<24x32xf32>
    %104 = arith.divf %102, %103 : vector<24x32xf32>
    %105 = vector.extract_strided_slice %85 {offsets = [0, 64], sizes = [24, 32], strides = [1, 1]} : vector<24x128xf32> to vector<24x32xf32>
    %106 = vector.extract_strided_slice %88 {offsets = [0, 64], sizes = [24, 32], strides = [1, 1]} : vector<24x128xf32> to vector<24x32xf32>
    %107 = arith.mulf %96, %106 : vector<24x32xf32>
    %108 = arith.addf %105, %107 : vector<24x32xf32>
    %109 = math.tanh %108 : vector<24x32xf32>
    %cst_40 = arith.constant 1.000000e+00 : f32
    %110 = vector.broadcast %cst_40 : f32 to vector<24x32xf32>
    %111 = arith.subf %110, %104 : vector<24x32xf32>
    %112 = arith.mulf %111, %109 : vector<24x32xf32>
    %113 = arith.mulf %104, %50 : vector<24x32xf32>
    %114 = arith.addf %112, %113 : vector<24x32xf32>
    %c0_41 = arith.constant 0 : index
    %c0_42 = arith.constant 0 : index
    %115 = vector.load %arg6[%c0_41, %c0_42] : memref<32x128xf32, #tpu.memory_space<vmem>>, vector<32x128xf32>
    %cst_43 = arith.constant dense<0.000000e+00> : vector<24x128xf32>
    %116 = tpu.matmul %114, %115, %cst_43 {dimension_numbers = #tpu.dot_dimension_numbers<[1], [0], [0], [1], [0, 0, 1, 1], [], []>} : vector<24x32xf32>, vector<32x128xf32>, vector<24x128xf32> -> vector<24x128xf32>
    %117 = arith.addf %116, %14 : vector<24x128xf32>
    %c0_44 = arith.constant 0 : index
    %c0_45 = arith.constant 0 : index
    %118 = vector.load %arg7[%c0_44, %c0_45] : memref<32x128xf32, #tpu.memory_space<vmem>>, vector<32x128xf32>
    %cst_46 = arith.constant dense<0.000000e+00> : vector<24x128xf32>
    %119 = tpu.matmul %82, %118, %cst_46 {dimension_numbers = #tpu.dot_dimension_numbers<[1], [0], [0], [1], [0, 0, 1, 1], [], []>} : vector<24x32xf32>, vector<32x128xf32>, vector<24x128xf32> -> vector<24x128xf32>
    %120 = arith.addf %119, %17 : vector<24x128xf32>
    %121 = vector.extract_strided_slice %117 {offsets = [0, 0], sizes = [24, 32], strides = [1, 1]} : vector<24x128xf32> to vector<24x32xf32>
    %122 = vector.extract_strided_slice %120 {offsets = [0, 0], sizes = [24, 32], strides = [1, 1]} : vector<24x128xf32> to vector<24x32xf32>
    %123 = arith.addf %121, %122 : vector<24x32xf32>
    %124 = arith.negf %123 : vector<24x32xf32>
    %125 = math.exp %124 : vector<24x32xf32>
    %cst_47 = arith.constant 1.000000e+00 : f32
    %126 = vector.broadcast %cst_47 : f32 to vector<24x32xf32>
    %127 = arith.addf %126, %125 : vector<24x32xf32>
    %128 = arith.divf %126, %127 : vector<24x32xf32>
    %129 = vector.extract_strided_slice %117 {offsets = [0, 32], sizes = [24, 32], strides = [1, 1]} : vector<24x128xf32> to vector<24x32xf32>
    %130 = vector.extract_strided_slice %120 {offsets = [0, 32], sizes = [24, 32], strides = [1, 1]} : vector<24x128xf32> to vector<24x32xf32>
    %131 = arith.addf %129, %130 : vector<24x32xf32>
    %132 = arith.negf %131 : vector<24x32xf32>
    %133 = math.exp %132 : vector<24x32xf32>
    %cst_48 = arith.constant 1.000000e+00 : f32
    %134 = vector.broadcast %cst_48 : f32 to vector<24x32xf32>
    %135 = arith.addf %134, %133 : vector<24x32xf32>
    %136 = arith.divf %134, %135 : vector<24x32xf32>
    %137 = vector.extract_strided_slice %117 {offsets = [0, 64], sizes = [24, 32], strides = [1, 1]} : vector<24x128xf32> to vector<24x32xf32>
    %138 = vector.extract_strided_slice %120 {offsets = [0, 64], sizes = [24, 32], strides = [1, 1]} : vector<24x128xf32> to vector<24x32xf32>
    %139 = arith.mulf %128, %138 : vector<24x32xf32>
    %140 = arith.addf %137, %139 : vector<24x32xf32>
    %141 = math.tanh %140 : vector<24x32xf32>
    %cst_49 = arith.constant 1.000000e+00 : f32
    %142 = vector.broadcast %cst_49 : f32 to vector<24x32xf32>
    %143 = arith.subf %142, %136 : vector<24x32xf32>
    %144 = arith.mulf %143, %141 : vector<24x32xf32>
    %145 = arith.mulf %136, %82 : vector<24x32xf32>
    %146 = arith.addf %144, %145 : vector<24x32xf32>
    %c2_i32 = arith.constant 2 : i32
    %147 = arith.index_cast %c2_i32 : i32 to index
    %c0_50 = arith.constant 0 : index
    %c0_51 = arith.constant 0 : index
    %148 = vector.load %arg16[%147, %c0_50, %c0_51] : memref<4x24x128xf32, #tpu.memory_space<vmem>>, vector<1x24x128xf32>
    %149 = vector.shape_cast %148 : vector<1x24x128xf32> to vector<24x128xf32>
    %c0_52 = arith.constant 0 : index
    %c0_53 = arith.constant 0 : index
    %150 = vector.load %arg3[%c0_52, %c0_53] : memref<32x128xf32, #tpu.memory_space<vmem>>, vector<32x128xf32>
    %cst_54 = arith.constant dense<0.000000e+00> : vector<24x128xf32>
    %151 = tpu.matmul %114, %150, %cst_54 {dimension_numbers = #tpu.dot_dimension_numbers<[1], [0], [0], [1], [0, 0, 1, 1], [], []>} : vector<24x32xf32>, vector<32x128xf32>, vector<24x128xf32> -> vector<24x128xf32>
    %152 = arith.addf %151, %11 : vector<24x128xf32>
    %153 = vector.extract_strided_slice %149 {offsets = [0, 0], sizes = [24, 32], strides = [1, 1]} : vector<24x128xf32> to vector<24x32xf32>
    %154 = vector.extract_strided_slice %152 {offsets = [0, 0], sizes = [24, 32], strides = [1, 1]} : vector<24x128xf32> to vector<24x32xf32>
    %155 = arith.addf %153, %154 : vector<24x32xf32>
    %156 = arith.negf %155 : vector<24x32xf32>
    %157 = math.exp %156 : vector<24x32xf32>
    %cst_55 = arith.constant 1.000000e+00 : f32
    %158 = vector.broadcast %cst_55 : f32 to vector<24x32xf32>
    %159 = arith.addf %158, %157 : vector<24x32xf32>
    %160 = arith.divf %158, %159 : vector<24x32xf32>
    %161 = vector.extract_strided_slice %149 {offsets = [0, 32], sizes = [24, 32], strides = [1, 1]} : vector<24x128xf32> to vector<24x32xf32>
    %162 = vector.extract_strided_slice %152 {offsets = [0, 32], sizes = [24, 32], strides = [1, 1]} : vector<24x128xf32> to vector<24x32xf32>
    %163 = arith.addf %161, %162 : vector<24x32xf32>
    %164 = arith.negf %163 : vector<24x32xf32>
    %165 = math.exp %164 : vector<24x32xf32>
    %cst_56 = arith.constant 1.000000e+00 : f32
    %166 = vector.broadcast %cst_56 : f32 to vector<24x32xf32>
    %167 = arith.addf %166, %165 : vector<24x32xf32>
    %168 = arith.divf %166, %167 : vector<24x32xf32>
    %169 = vector.extract_strided_slice %149 {offsets = [0, 64], sizes = [24, 32], strides = [1, 1]} : vector<24x128xf32> to vector<24x32xf32>
    %170 = vector.extract_strided_slice %152 {offsets = [0, 64], sizes = [24, 32], strides = [1, 1]} : vector<24x128xf32> to vector<24x32xf32>
    %171 = arith.mulf %160, %170 : vector<24x32xf32>
    %172 = arith.addf %169, %171 : vector<24x32xf32>
    %173 = math.tanh %172 : vector<24x32xf32>
    %cst_57 = arith.constant 1.000000e+00 : f32
    %174 = vector.broadcast %cst_57 : f32 to vector<24x32xf32>
    %175 = arith.subf %174, %168 : vector<24x32xf32>
    %176 = arith.mulf %175, %173 : vector<24x32xf32>
    %177 = arith.mulf %168, %114 : vector<24x32xf32>
    %178 = arith.addf %176, %177 : vector<24x32xf32>
    %c0_58 = arith.constant 0 : index
    %c0_59 = arith.constant 0 : index
    %179 = vector.load %arg6[%c0_58, %c0_59] : memref<32x128xf32, #tpu.memory_space<vmem>>, vector<32x128xf32>
    %cst_60 = arith.constant dense<0.000000e+00> : vector<24x128xf32>
    %180 = tpu.matmul %178, %179, %cst_60 {dimension_numbers = #tpu.dot_dimension_numbers<[1], [0], [0], [1], [0, 0, 1, 1], [], []>} : vector<24x32xf32>, vector<32x128xf32>, vector<24x128xf32> -> vector<24x128xf32>
    %181 = arith.addf %180, %14 : vector<24x128xf32>
    %c0_61 = arith.constant 0 : index
    %c0_62 = arith.constant 0 : index
    %182 = vector.load %arg7[%c0_61, %c0_62] : memref<32x128xf32, #tpu.memory_space<vmem>>, vector<32x128xf32>
    %cst_63 = arith.constant dense<0.000000e+00> : vector<24x128xf32>
    %183 = tpu.matmul %146, %182, %cst_63 {dimension_numbers = #tpu.dot_dimension_numbers<[1], [0], [0], [1], [0, 0, 1, 1], [], []>} : vector<24x32xf32>, vector<32x128xf32>, vector<24x128xf32> -> vector<24x128xf32>
    %184 = arith.addf %183, %17 : vector<24x128xf32>
    %185 = vector.extract_strided_slice %181 {offsets = [0, 0], sizes = [24, 32], strides = [1, 1]} : vector<24x128xf32> to vector<24x32xf32>
    %186 = vector.extract_strided_slice %184 {offsets = [0, 0], sizes = [24, 32], strides = [1, 1]} : vector<24x128xf32> to vector<24x32xf32>
    %187 = arith.addf %185, %186 : vector<24x32xf32>
    %188 = arith.negf %187 : vector<24x32xf32>
    %189 = math.exp %188 : vector<24x32xf32>
    %cst_64 = arith.constant 1.000000e+00 : f32
    %190 = vector.broadcast %cst_64 : f32 to vector<24x32xf32>
    %191 = arith.addf %190, %189 : vector<24x32xf32>
    %192 = arith.divf %190, %191 : vector<24x32xf32>
    %193 = vector.extract_strided_slice %181 {offsets = [0, 32], sizes = [24, 32], strides = [1, 1]} : vector<24x128xf32> to vector<24x32xf32>
    %194 = vector.extract_strided_slice %184 {offsets = [0, 32], sizes = [24, 32], strides = [1, 1]} : vector<24x128xf32> to vector<24x32xf32>
    %195 = arith.addf %193, %194 : vector<24x32xf32>
    %196 = arith.negf %195 : vector<24x32xf32>
    %197 = math.exp %196 : vector<24x32xf32>
    %cst_65 = arith.constant 1.000000e+00 : f32
    %198 = vector.broadcast %cst_65 : f32 to vector<24x32xf32>
    %199 = arith.addf %198, %197 : vector<24x32xf32>
    %200 = arith.divf %198, %199 : vector<24x32xf32>
    %201 = vector.extract_strided_slice %181 {offsets = [0, 64], sizes = [24, 32], strides = [1, 1]} : vector<24x128xf32> to vector<24x32xf32>
    %202 = vector.extract_strided_slice %184 {offsets = [0, 64], sizes = [24, 32], strides = [1, 1]} : vector<24x128xf32> to vector<24x32xf32>
    %203 = arith.mulf %192, %202 : vector<24x32xf32>
    %204 = arith.addf %201, %203 : vector<24x32xf32>
    %205 = math.tanh %204 : vector<24x32xf32>
    %cst_66 = arith.constant 1.000000e+00 : f32
    %206 = vector.broadcast %cst_66 : f32 to vector<24x32xf32>
    %207 = arith.subf %206, %200 : vector<24x32xf32>
    %208 = arith.mulf %207, %205 : vector<24x32xf32>
    %209 = arith.mulf %200, %146 : vector<24x32xf32>
    %210 = arith.addf %208, %209 : vector<24x32xf32>
    %c3_i32 = arith.constant 3 : i32
    %211 = arith.index_cast %c3_i32 : i32 to index
    %c0_67 = arith.constant 0 : index
    %c0_68 = arith.constant 0 : index
    %212 = vector.load %arg16[%211, %c0_67, %c0_68] : memref<4x24x128xf32, #tpu.memory_space<vmem>>, vector<1x24x128xf32>
    %213 = vector.shape_cast %212 : vector<1x24x128xf32> to vector<24x128xf32>
    %c0_69 = arith.constant 0 : index
    %c0_70 = arith.constant 0 : index
    %214 = vector.load %arg3[%c0_69, %c0_70] : memref<32x128xf32, #tpu.memory_space<vmem>>, vector<32x128xf32>
    %cst_71 = arith.constant dense<0.000000e+00> : vector<24x128xf32>
    %215 = tpu.matmul %178, %214, %cst_71 {dimension_numbers = #tpu.dot_dimension_numbers<[1], [0], [0], [1], [0, 0, 1, 1], [], []>} : vector<24x32xf32>, vector<32x128xf32>, vector<24x128xf32> -> vector<24x128xf32>
    %216 = arith.addf %215, %11 : vector<24x128xf32>
    %217 = vector.extract_strided_slice %213 {offsets = [0, 0], sizes = [24, 32], strides = [1, 1]} : vector<24x128xf32> to vector<24x32xf32>
    %218 = vector.extract_strided_slice %216 {offsets = [0, 0], sizes = [24, 32], strides = [1, 1]} : vector<24x128xf32> to vector<24x32xf32>
    %219 = arith.addf %217, %218 : vector<24x32xf32>
    %220 = arith.negf %219 : vector<24x32xf32>
    %221 = math.exp %220 : vector<24x32xf32>
    %cst_72 = arith.constant 1.000000e+00 : f32
    %222 = vector.broadcast %cst_72 : f32 to vector<24x32xf32>
    %223 = arith.addf %222, %221 : vector<24x32xf32>
    %224 = arith.divf %222, %223 : vector<24x32xf32>
    %225 = vector.extract_strided_slice %213 {offsets = [0, 32], sizes = [24, 32], strides = [1, 1]} : vector<24x128xf32> to vector<24x32xf32>
    %226 = vector.extract_strided_slice %216 {offsets = [0, 32], sizes = [24, 32], strides = [1, 1]} : vector<24x128xf32> to vector<24x32xf32>
    %227 = arith.addf %225, %226 : vector<24x32xf32>
    %228 = arith.negf %227 : vector<24x32xf32>
    %229 = math.exp %228 : vector<24x32xf32>
    %cst_73 = arith.constant 1.000000e+00 : f32
    %230 = vector.broadcast %cst_73 : f32 to vector<24x32xf32>
    %231 = arith.addf %230, %229 : vector<24x32xf32>
    %232 = arith.divf %230, %231 : vector<24x32xf32>
    %233 = vector.extract_strided_slice %213 {offsets = [0, 64], sizes = [24, 32], strides = [1, 1]} : vector<24x128xf32> to vector<24x32xf32>
    %234 = vector.extract_strided_slice %216 {offsets = [0, 64], sizes = [24, 32], strides = [1, 1]} : vector<24x128xf32> to vector<24x32xf32>
    %235 = arith.mulf %224, %234 : vector<24x32xf32>
    %236 = arith.addf %233, %235 : vector<24x32xf32>
    %237 = math.tanh %236 : vector<24x32xf32>
    %cst_74 = arith.constant 1.000000e+00 : f32
    %238 = vector.broadcast %cst_74 : f32 to vector<24x32xf32>
    %239 = arith.subf %238, %232 : vector<24x32xf32>
    %240 = arith.mulf %239, %237 : vector<24x32xf32>
    %241 = arith.mulf %232, %178 : vector<24x32xf32>
    %242 = arith.addf %240, %241 : vector<24x32xf32>
    %c0_75 = arith.constant 0 : index
    %c0_76 = arith.constant 0 : index
    %243 = vector.load %arg6[%c0_75, %c0_76] : memref<32x128xf32, #tpu.memory_space<vmem>>, vector<32x128xf32>
    %cst_77 = arith.constant dense<0.000000e+00> : vector<24x128xf32>
    %244 = tpu.matmul %242, %243, %cst_77 {dimension_numbers = #tpu.dot_dimension_numbers<[1], [0], [0], [1], [0, 0, 1, 1], [], []>} : vector<24x32xf32>, vector<32x128xf32>, vector<24x128xf32> -> vector<24x128xf32>
    %245 = arith.addf %244, %14 : vector<24x128xf32>
    %c0_78 = arith.constant 0 : index
    %c0_79 = arith.constant 0 : index
    %246 = vector.load %arg7[%c0_78, %c0_79] : memref<32x128xf32, #tpu.memory_space<vmem>>, vector<32x128xf32>
    %cst_80 = arith.constant dense<0.000000e+00> : vector<24x128xf32>
    %247 = tpu.matmul %210, %246, %cst_80 {dimension_numbers = #tpu.dot_dimension_numbers<[1], [0], [0], [1], [0, 0, 1, 1], [], []>} : vector<24x32xf32>, vector<32x128xf32>, vector<24x128xf32> -> vector<24x128xf32>
    %248 = arith.addf %247, %17 : vector<24x128xf32>
    %249 = vector.extract_strided_slice %245 {offsets = [0, 0], sizes = [24, 32], strides = [1, 1]} : vector<24x128xf32> to vector<24x32xf32>
    %250 = vector.extract_strided_slice %248 {offsets = [0, 0], sizes = [24, 32], strides = [1, 1]} : vector<24x128xf32> to vector<24x32xf32>
    %251 = arith.addf %249, %250 : vector<24x32xf32>
    %252 = arith.negf %251 : vector<24x32xf32>
    %253 = math.exp %252 : vector<24x32xf32>
    %cst_81 = arith.constant 1.000000e+00 : f32
    %254 = vector.broadcast %cst_81 : f32 to vector<24x32xf32>
    %255 = arith.addf %254, %253 : vector<24x32xf32>
    %256 = arith.divf %254, %255 : vector<24x32xf32>
    %257 = vector.extract_strided_slice %245 {offsets = [0, 32], sizes = [24, 32], strides = [1, 1]} : vector<24x128xf32> to vector<24x32xf32>
    %258 = vector.extract_strided_slice %248 {offsets = [0, 32], sizes = [24, 32], strides = [1, 1]} : vector<24x128xf32> to vector<24x32xf32>
    %259 = arith.addf %257, %258 : vector<24x32xf32>
    %260 = arith.negf %259 : vector<24x32xf32>
    %261 = math.exp %260 : vector<24x32xf32>
    %cst_82 = arith.constant 1.000000e+00 : f32
    %262 = vector.broadcast %cst_82 : f32 to vector<24x32xf32>
    %263 = arith.addf %262, %261 : vector<24x32xf32>
    %264 = arith.divf %262, %263 : vector<24x32xf32>
    %265 = vector.extract_strided_slice %245 {offsets = [0, 64], sizes = [24, 32], strides = [1, 1]} : vector<24x128xf32> to vector<24x32xf32>
    %266 = vector.extract_strided_slice %248 {offsets = [0, 64], sizes = [24, 32], strides = [1, 1]} : vector<24x128xf32> to vector<24x32xf32>
    %267 = arith.mulf %256, %266 : vector<24x32xf32>
    %268 = arith.addf %265, %267 : vector<24x32xf32>
    %269 = math.tanh %268 : vector<24x32xf32>
    %cst_83 = arith.constant 1.000000e+00 : f32
    %270 = vector.broadcast %cst_83 : f32 to vector<24x32xf32>
    %271 = arith.subf %270, %264 : vector<24x32xf32>
    %272 = arith.mulf %271, %269 : vector<24x32xf32>
    %273 = arith.mulf %264, %210 : vector<24x32xf32>
    %274 = arith.addf %272, %273 : vector<24x32xf32>
    %c4_i32 = arith.constant 4 : i32
    %c0_84 = arith.constant 0 : index
    %c0_85 = arith.constant 0 : index
    %275 = vector.load %arg10[%c0_84, %c0_85] : memref<1x32xf32, #tpu.memory_space<vmem>>, vector<1x32xf32>
    %c0_86 = arith.constant 0 : index
    %c0_87 = arith.constant 0 : index
    %276 = vector.load %arg11[%c0_86, %c0_87] : memref<1x32xf32, #tpu.memory_space<vmem>>, vector<1x32xf32>
    %cst_88 = arith.constant dense<0.000000e+00> : vector<24xf32>
    %277 = vector.multi_reduction <add>, %242, %cst_88 [1] : vector<24x32xf32> to vector<24xf32>
    %278 = vector.shape_cast %277 : vector<24xf32> to vector<24x1xf32>
    %cst_89 = arith.constant 3.200000e+01 : f32
    %279 = vector.broadcast %cst_89 : f32 to vector<24x1xf32>
    %280 = arith.divf %278, %279 : vector<24x1xf32>
    %281 = vector.broadcast %280 : vector<24x1xf32> to vector<24x32xf32>
    %282 = arith.subf %242, %281 : vector<24x32xf32>
    %283 = arith.mulf %282, %282 : vector<24x32xf32>
    %cst_90 = arith.constant dense<0.000000e+00> : vector<24xf32>
    %284 = vector.multi_reduction <add>, %283, %cst_90 [1] : vector<24x32xf32> to vector<24xf32>
    %285 = vector.shape_cast %284 : vector<24xf32> to vector<24x1xf32>
    %cst_91 = arith.constant 3.200000e+01 : f32
    %286 = vector.broadcast %cst_91 : f32 to vector<24x1xf32>
    %287 = arith.divf %285, %286 : vector<24x1xf32>
    %288 = vector.broadcast %280 : vector<24x1xf32> to vector<24x32xf32>
    %289 = arith.subf %242, %288 : vector<24x32xf32>
    %cst_92 = arith.constant 9.99999974E-6 : f32
    %290 = vector.broadcast %cst_92 : f32 to vector<24x1xf32>
    %291 = arith.addf %287, %290 : vector<24x1xf32>
    %292 = math.rsqrt %291 : vector<24x1xf32>
    %293 = vector.broadcast %292 : vector<24x1xf32> to vector<24x32xf32>
    %294 = arith.mulf %289, %293 : vector<24x32xf32>
    %295 = vector.broadcast %275 : vector<1x32xf32> to vector<24x32xf32>
    %296 = arith.mulf %294, %295 : vector<24x32xf32>
    %297 = vector.broadcast %276 : vector<1x32xf32> to vector<24x32xf32>
    %298 = arith.addf %296, %297 : vector<24x32xf32>
    %c0_93 = arith.constant 0 : index
    %c0_94 = arith.constant 0 : index
    %299 = vector.load %arg12[%c0_93, %c0_94] : memref<32x128xf32, #tpu.memory_space<vmem>>, vector<32x128xf32>
    %cst_95 = arith.constant dense<0.000000e+00> : vector<24x128xf32>
    %300 = tpu.matmul %298, %299, %cst_95 {dimension_numbers = #tpu.dot_dimension_numbers<[1], [0], [0], [1], [0, 0, 1, 1], [], []>} : vector<24x32xf32>, vector<32x128xf32>, vector<24x128xf32> -> vector<24x128xf32>
    %cst_96 = arith.constant dense<0.000000e+00> : vector<24xf32>
    %301 = vector.multi_reduction <add>, %274, %cst_96 [1] : vector<24x32xf32> to vector<24xf32>
    %302 = vector.shape_cast %301 : vector<24xf32> to vector<24x1xf32>
    %cst_97 = arith.constant 3.200000e+01 : f32
    %303 = vector.broadcast %cst_97 : f32 to vector<24x1xf32>
    %304 = arith.divf %302, %303 : vector<24x1xf32>
    %305 = vector.broadcast %304 : vector<24x1xf32> to vector<24x32xf32>
    %306 = arith.subf %274, %305 : vector<24x32xf32>
    %307 = arith.mulf %306, %306 : vector<24x32xf32>
    %cst_98 = arith.constant dense<0.000000e+00> : vector<24xf32>
    %308 = vector.multi_reduction <add>, %307, %cst_98 [1] : vector<24x32xf32> to vector<24xf32>
    %309 = vector.shape_cast %308 : vector<24xf32> to vector<24x1xf32>
    %cst_99 = arith.constant 3.200000e+01 : f32
    %310 = vector.broadcast %cst_99 : f32 to vector<24x1xf32>
    %311 = arith.divf %309, %310 : vector<24x1xf32>
    %312 = vector.broadcast %304 : vector<24x1xf32> to vector<24x32xf32>
    %313 = arith.subf %274, %312 : vector<24x32xf32>
    %cst_100 = arith.constant 9.99999974E-6 : f32
    %314 = vector.broadcast %cst_100 : f32 to vector<24x1xf32>
    %315 = arith.addf %311, %314 : vector<24x1xf32>
    %316 = math.rsqrt %315 : vector<24x1xf32>
    %317 = vector.broadcast %316 : vector<24x1xf32> to vector<24x32xf32>
    %318 = arith.mulf %313, %317 : vector<24x32xf32>
    %319 = vector.broadcast %275 : vector<1x32xf32> to vector<24x32xf32>
    %320 = arith.mulf %318, %319 : vector<24x32xf32>
    %321 = vector.broadcast %276 : vector<1x32xf32> to vector<24x32xf32>
    %322 = arith.addf %320, %321 : vector<24x32xf32>
    %c0_101 = arith.constant 0 : index
    %c0_102 = arith.constant 0 : index
    %323 = vector.load %arg13[%c0_101, %c0_102] : memref<32x128xf32, #tpu.memory_space<vmem>>, vector<32x128xf32>
    %cst_103 = arith.constant dense<0.000000e+00> : vector<24x128xf32>
    %324 = tpu.matmul %322, %323, %cst_103 {dimension_numbers = #tpu.dot_dimension_numbers<[1], [0], [0], [1], [0, 0, 1, 1], [], []>} : vector<24x32xf32>, vector<32x128xf32>, vector<24x128xf32> -> vector<24x128xf32>
    %325 = arith.addf %300, %324 : vector<24x128xf32>
    %c0_104 = arith.constant 0 : index
    %c0_105 = arith.constant 0 : index
    %326 = vector.load %arg14[%c0_104, %c0_105] : memref<1x128xf32, #tpu.memory_space<vmem>>, vector<1x128xf32>
    %327 = vector.broadcast %326 : vector<1x128xf32> to vector<24x128xf32>
    %328 = arith.addf %325, %327 : vector<24x128xf32>
    %c0_106 = arith.constant 0 : index
    %c0_107 = arith.constant 0 : index
    %329 = vector.load %arg15[%c0_106, %c0_107] : memref<24x128xf32, #tpu.memory_space<vmem>>, vector<24x128xf32>
    tpu.vector_store %arg15[%c0_106, %c0_107], %328 {strides = array<i32>} : memref<24x128xf32, #tpu.memory_space<vmem>>, vector<24x128xf32>,
    return
  }
  func.func @transform_0(%arg0: i32) -> (i32, i32, i32) {
    %c0_i32 = arith.constant 0 : i32
    %c0_i32_0 = arith.constant 0 : i32
    %c0_i32_1 = arith.constant 0 : i32
    return %c0_i32, %arg0, %c0_i32_0 : i32, i32, i32
  }
  func.func @transform_1(%arg0: i32) -> (i32, i32) {
    %c0_i32 = arith.constant 0 : i32
    %c0_i32_0 = arith.constant 0 : i32
    %c0_i32_1 = arith.constant 0 : i32
    return %c0_i32, %c0_i32_0 : i32, i32
  }
  func.func @transform_2(%arg0: i32) -> (i32, i32) {
    %c0_i32 = arith.constant 0 : i32
    %c0_i32_0 = arith.constant 0 : i32
    %c0_i32_1 = arith.constant 0 : i32
    return %c0_i32, %c0_i32_0 : i32, i32
  }
  func.func @transform_3(%arg0: i32) -> (i32, i32) {
    %c0_i32 = arith.constant 0 : i32
    %c0_i32_0 = arith.constant 0 : i32
    %c0_i32_1 = arith.constant 0 : i32
    return %c0_i32, %c0_i32_0 : i32, i32
  }
  func.func @transform_4(%arg0: i32) -> (i32, i32) {
    %c0_i32 = arith.constant 0 : i32
    %c0_i32_0 = arith.constant 0 : i32
    %c0_i32_1 = arith.constant 0 : i32
    return %c0_i32, %c0_i32_0 : i32, i32
  }
  func.func @transform_5(%arg0: i32) -> (i32, i32) {
    %c0_i32 = arith.constant 0 : i32
    %c0_i32_0 = arith.constant 0 : i32
    %c0_i32_1 = arith.constant 0 : i32
    return %c0_i32, %c0_i32_0 : i32, i32
  }
  func.func @transform_6(%arg0: i32) -> (i32, i32) {
    %c0_i32 = arith.constant 0 : i32
    %c0_i32_0 = arith.constant 0 : i32
    %c0_i32_1 = arith.constant 0 : i32
    return %c0_i32, %c0_i32_0 : i32, i32
  }
  func.func @transform_7(%arg0: i32) -> (i32, i32) {
    %c0_i32 = arith.constant 0 : i32
    %c0_i32_0 = arith.constant 0 : i32
    %c0_i32_1 = arith.constant 0 : i32
    return %c0_i32, %c0_i32_0 : i32, i32
  }
  func.func @transform_8(%arg0: i32) -> (i32, i32) {
    %c0_i32 = arith.constant 0 : i32
    %c0_i32_0 = arith.constant 0 : i32
    %c0_i32_1 = arith.constant 0 : i32
    return %c0_i32, %c0_i32_0 : i32, i32
  }
  func.func @transform_9(%arg0: i32) -> (i32, i32) {
    %c0_i32 = arith.constant 0 : i32
    %c0_i32_0 = arith.constant 0 : i32
    %c0_i32_1 = arith.constant 0 : i32
    return %c0_i32, %c0_i32_0 : i32, i32
  }
  func.func @transform_10(%arg0: i32) -> (i32, i32) {
    %c0_i32 = arith.constant 0 : i32
    %c0_i32_0 = arith.constant 0 : i32
    %c0_i32_1 = arith.constant 0 : i32
    return %c0_i32, %c0_i32_0 : i32, i32
  }
  func.func @transform_11(%arg0: i32) -> (i32, i32) {
    %c0_i32 = arith.constant 0 : i32
    %c0_i32_0 = arith.constant 0 : i32
    %c0_i32_1 = arith.constant 0 : i32
    return %c0_i32, %c0_i32_0 : i32, i32
  }
  func.func @transform_12(%arg0: i32) -> (i32, i32) {
    %c0_i32 = arith.constant 0 : i32
    %c0_i32_0 = arith.constant 0 : i32
    %c0_i32_1 = arith.constant 0 : i32
    return %c0_i32, %c0_i32_0 : i32, i32
  }
  func.func @transform_13(%arg0: i32) -> (i32, i32) {
    %c0_i32 = arith.constant 0 : i32
    %c0_i32_0 = arith.constant 0 : i32
    %c0_i32_1 = arith.constant 0 : i32
    return %c0_i32, %c0_i32_0 : i32, i32
  }
  func.func @transform_14(%arg0: i32) -> (i32, i32) {
    %c0_i32 = arith.constant 0 : i32
    %c0_i32_0 = arith.constant 0 : i32
    return %arg0, %c0_i32 : i32, i32
  }
}

</mosaic_0001>

<llo_original>
// kernel: tpu_custom_call.1
$region0: #{tpu_custom_call.1}
  #allocation0 [shape = 'u32[]', space=smem, size = 0x4, offset = 0x4, fixed_abs, tag = 'smem constant byte address 0x4 - core index']
  #allocation1 [shape = 'u32[144,128]{1,0:T(1,128)}', space=vmem, size = 0x12000, scoped, tag = 'internal scratch']
  #allocation2 [shape = 'f32[4,24,128]{2,1,0:T(8,128)}', space=vmem, size = 0xc000, scoped, tag = 'scratch operand']
  %s0 = inlined_call_operand.hbm [shape: f32[4,24,32], index: 0, kind: input, shape index: {}]
  %s1 = inlined_call_operand.hbm [shape: f32[32,128], index: 1, kind: input, shape index: {}]
  %s2 = inlined_call_operand.hbm [shape: f32[32,128], index: 2, kind: input, shape index: {}]
  %s3 = inlined_call_operand.vmem [shape: f32[1,128], index: 3, kind: input, shape index: {}]
  %s4 = inlined_call_operand.vmem [shape: f32[1,128], index: 4, kind: input, shape index: {}]
  %s5 = inlined_call_operand.hbm [shape: f32[32,128], index: 5, kind: input, shape index: {}]
  %s6 = inlined_call_operand.hbm [shape: f32[32,128], index: 6, kind: input, shape index: {}]
  %s7 = inlined_call_operand.vmem [shape: f32[1,128], index: 7, kind: input, shape index: {}]
  %s8 = inlined_call_operand.vmem [shape: f32[1,128], index: 8, kind: input, shape index: {}]
  %s9 = inlined_call_operand.vmem [shape: f32[1,32], index: 9, kind: input, shape index: {}]
  %s10 = inlined_call_operand.vmem [shape: f32[1,32], index: 10, kind: input, shape index: {}]
  %s11 = inlined_call_operand.vmem [shape: f32[32,128], index: 11, kind: input, shape index: {}]
  %s12 = inlined_call_operand.hbm [shape: f32[32,128], index: 12, kind: input, shape index: {}]
  %s13 = inlined_call_operand.vmem [shape: f32[1,128], index: 13, kind: input, shape index: {}]
  %s14 = inlined_call_operand.hbm [shape: f32[24,128], index: 14, kind: output, shape index: {}]
  %s15 = sld [smem:[#allocation0]]
  $region90: #{tpu_custom_call.1} parent=0
    _
  %s17 = ssub.s32 1, %s15
  %s18 = scalar_select 0, %s17, %s15
  $region1: #{tpu_custom_call.1} parent=0
    #allocation3 [shape = 'u8[49152]{0}', space=vmem, size = 0xc000, scoped, tag = 'input window, operand 0, single buffered']
    #allocation4 [shape = 's32[1]{0}', space=sflag, size = 0x4, scoped, tag = 'scoped memory for tpu_custom_call.1']
    #allocation5 [shape = 's32[1]{0}', space=sflag, size = 0x4, scoped, tag = 'scoped memory for tpu_custom_call.1']
    #allocation6 [shape = 'u8[16384]{0}', space=vmem, size = 0x4000, scoped, tag = 'input window, operand 1, single buffered']
    #allocation7 [shape = 's32[1]{0}', space=sflag, size = 0x4, scoped, tag = 'scoped memory for tpu_custom_call.1']
    #allocation8 [shape = 'u8[16384]{0}', space=vmem, size = 0x4000, scoped, tag = 'input window, operand 2, single buffered']
    #allocation9 [shape = 'u8[16384]{0}', space=vmem, size = 0x4000, scoped, tag = 'input window, operand 5, single buffered']
    #allocation10 [shape = 's32[1]{0}', space=sflag, size = 0x4, scoped, tag = 'scoped memory for tpu_custom_call.1']
    #allocation11 [shape = 'u8[16384]{0}', space=vmem, size = 0x4000, scoped, tag = 'input window, operand 6, single buffered']
    #allocation12 [shape = 'u8[16384]{0}', space=vmem, size = 0x4000, scoped, tag = 'input window, operand 12, single buffered']
    #allocation13 [shape = 's32[1]{0}', space=sflag, size = 0x4, scoped, tag = 'scoped memory for tpu_custom_call.1']
    #allocation14 [shape = 'u8[12288]{0}', space=vmem, size = 0x3000, scoped, tag = 'output window, operand 0, single buffered']
    %19 = vsyncpa [#allocation4], 0
    %20 = vsyncpa [#allocation7], 0
    %21 = vsyncpa [#allocation10], 0
    %22 = vsyncpa [#allocation13], 0
    %23 = vsyncpa [#allocation5], 0
    // Predicated region
    $region2: #{tpu_custom_call.1} parent=1 // pred_check
      _
    $region3: #{tpu_custom_call.1} parent=1 // pred_check_branch
      %25 = sbr.rel (0) target = $region5
    $region4: #{tpu_custom_call.1} parent=1 // pred_region
      %s27 = ssub.s32 1536, 1536
      %28 = vsyncadd [#allocation4], %s27
      %s29 = sshll.u32 [#allocation3], 4
      %s30 = int_to_ptr.vmem [resolvable:$true] %s29
      %35 = dma.hbm_to_vmem [thread:$0]  %s0, 1536, %s30, [#allocation4], 128, 128, 8
    $region5: #{tpu_custom_call.1} parent=1 // pred_fallthru
      _
    // Predicated region
    $region6: #{tpu_custom_call.1} parent=1 // pred_check
      _
    $region7: #{tpu_custom_call.1} parent=1 // pred_check_branch
      %37 = sbr.rel (0) target = $region9
    $region8: #{tpu_custom_call.1} parent=1 // pred_region
      %s39 = ssub.s32 512, 512
      %40 = vsyncadd [#allocation7], %s39
      %s41 = sshll.u32 [#allocation6], 4
      %s42 = int_to_ptr.vmem [resolvable:$true] %s41
      %47 = dma.hbm_to_vmem [thread:$0]  %s1, 512, %s42, [#allocation7], 128, 128, 8
    $region9: #{tpu_custom_call.1} parent=1 // pred_fallthru
      _
    // Predicated region
    $region10: #{tpu_custom_call.1} parent=1 // pred_check
      _
    $region11: #{tpu_custom_call.1} parent=1 // pred_check_branch
      %49 = sbr.rel (0) target = $region13
    $region12: #{tpu_custom_call.1} parent=1 // pred_region
      %s51 = ssub.s32 512, 512
      %52 = vsyncadd [#allocation7], %s51
      %s53 = sshll.u32 [#allocation8], 4
      %s54 = int_to_ptr.vmem [resolvable:$true] %s53
      %59 = dma.hbm_to_vmem [thread:$0]  %s2, 512, %s54, [#allocation7], 128, 128, 8
    $region13: #{tpu_custom_call.1} parent=1 // pred_fallthru
      _
    // Predicated region
    $region14: #{tpu_custom_call.1} parent=1 // pred_check
      _
    $region15: #{tpu_custom_call.1} parent=1 // pred_check_branch
      %61 = sbr.rel (0) target = $region17
    $region16: #{tpu_custom_call.1} parent=1 // pred_region
      _
    $region17: #{tpu_custom_call.1} parent=1 // pred_fallthru
      _
    // Predicated region
    $region18: #{tpu_custom_call.1} parent=1 // pred_check
      _
    $region19: #{tpu_custom_call.1} parent=1 // pred_check_branch
      %63 = sbr.rel (0) target = $region21
    $region20: #{tpu_custom_call.1} parent=1 // pred_region
      _
    $region21: #{tpu_custom_call.1} parent=1 // pred_fallthru
      _
    // Predicated region
    $region22: #{tpu_custom_call.1} parent=1 // pred_check
      _
    $region23: #{tpu_custom_call.1} parent=1 // pred_check_branch
      %65 = sbr.rel (0) target = $region25
    $region24: #{tpu_custom_call.1} parent=1 // pred_region
      %s67 = ssub.s32 512, 512
      %68 = vsyncadd [#allocation10], %s67
      %s69 = sshll.u32 [#allocation9], 4
      %s70 = int_to_ptr.vmem [resolvable:$true] %s69
      %75 = dma.hbm_to_vmem [thread:$0]  %s5, 512, %s70, [#allocation10], 128, 128, 8
    $region25: #{tpu_custom_call.1} parent=1 // pred_fallthru
      _
    // Predicated region
    $region26: #{tpu_custom_call.1} parent=1 // pred_check
      _
    $region27: #{tpu_custom_call.1} parent=1 // pred_check_branch
      %77 = sbr.rel (0) target = $region29
    $region28: #{tpu_custom_call.1} parent=1 // pred_region
      %s79 = ssub.s32 512, 512
      %80 = vsyncadd [#allocation10], %s79
      %s81 = sshll.u32 [#allocation11], 4
      %s82 = int_to_ptr.vmem [resolvable:$true] %s81
      %87 = dma.hbm_to_vmem [thread:$0]  %s6, 512, %s82, [#allocation10], 128, 128, 8
    $region29: #{tpu_custom_call.1} parent=1 // pred_fallthru
      _
    // Predicated region
    $region30: #{tpu_custom_call.1} parent=1 // pred_check
      _
    $region31: #{tpu_custom_call.1} parent=1 // pred_check_branch
      %89 = sbr.rel (0) target = $region33
    $region32: #{tpu_custom_call.1} parent=1 // pred_region
      _
    $region33: #{tpu_custom_call.1} parent=1 // pred_fallthru
      _
    // Predicated region
    $region34: #{tpu_custom_call.1} parent=1 // pred_check
      _
    $region35: #{tpu_custom_call.1} parent=1 // pred_check_branch
      %91 = sbr.rel (0) target = $region37
    $region36: #{tpu_custom_call.1} parent=1 // pred_region
      _
    $region37: #{tpu_custom_call.1} parent=1 // pred_fallthru
      _
    // Predicated region
    $region38: #{tpu_custom_call.1} parent=1 // pred_check
      _
    $region39: #{tpu_custom_call.1} parent=1 // pred_check_branch
      %93 = sbr.rel (0) target = $region41
    $region40: #{tpu_custom_call.1} parent=1 // pred_region
      _
    $region41: #{tpu_custom_call.1} parent=1 // pred_fallthru
      _
    // Predicated region
    $region42: #{tpu_custom_call.1} parent=1 // pred_check
      _
    $region43: #{tpu_custom_call.1} parent=1 // pred_check_branch
      %95 = sbr.rel (0) target = $region45
    $region44: #{tpu_custom_call.1} parent=1 // pred_region
      _
    $region45: #{tpu_custom_call.1} parent=1 // pred_fallthru
      _
    // Predicated region
    $region46: #{tpu_custom_call.1} parent=1 // pred_check
      _
    $region47: #{tpu_custom_call.1} parent=1 // pred_check_branch
      %97 = sbr.rel (0) target = $region49
    $region48: #{tpu_custom_call.1} parent=1 // pred_region
      _
    $region49: #{tpu_custom_call.1} parent=1 // pred_fallthru
      _
    // Predicated region
    $region50: #{tpu_custom_call.1} parent=1 // pred_check
      _
    $region51: #{tpu_custom_call.1} parent=1 // pred_check_branch
      %99 = sbr.rel (0) target = $region53
    $region52: #{tpu_custom_call.1} parent=1 // pred_region
      %s101 = ssub.s32 512, 512
      %102 = vsyncadd [#allocation13], %s101
      %s103 = sshll.u32 [#allocation12], 4
      %s104 = int_to_ptr.vmem [resolvable:$true] %s103
      %109 = dma.hbm_to_vmem [thread:$0]  %s12, 512, %s104, [#allocation13], 128, 128, 8
    $region53: #{tpu_custom_call.1} parent=1 // pred_fallthru
      _
    // Predicated region
    $region54: #{tpu_custom_call.1} parent=1 // pred_check
      _
    $region55: #{tpu_custom_call.1} parent=1 // pred_check_branch
      %111 = sbr.rel (0) target = $region57
    $region56: #{tpu_custom_call.1} parent=1 // pred_region
      _
    $region57: #{tpu_custom_call.1} parent=1 // pred_fallthru
      _
    // Predicated region
    $region58: #{tpu_custom_call.1} parent=1 // pred_check
      _
    $region59: #{tpu_custom_call.1} parent=1 // pred_check_branch
      %113 = sbr.rel (0) target = $region61
    $region60: #{tpu_custom_call.1} parent=1 // pred_region
      %114 = dma.done [#allocation4], 1536
    $region61: #{tpu_custom_call.1} parent=1 // pred_fallthru
      _
    // Predicated region
    $region62: #{tpu_custom_call.1} parent=1 // pred_check
      _
    $region63: #{tpu_custom_call.1} parent=1 // pred_check_branch
      %116 = sbr.rel (0) target = $region65
    $region64: #{tpu_custom_call.1} parent=1 // pred_region
      %117 = dma.done [#allocation7], 512
    $region65: #{tpu_custom_call.1} parent=1 // pred_fallthru
      _
    // Predicated region
    $region66: #{tpu_custom_call.1} parent=1 // pred_check
      _
    $region67: #{tpu_custom_call.1} parent=1 // pred_check_branch
      %119 = sbr.rel (0) target = $region69
    $region68: #{tpu_custom_call.1} parent=1 // pred_region
      %120 = dma.done [#allocation7], 512
    $region69: #{tpu_custom_call.1} parent=1 // pred_fallthru
      _
    // Predicated region
    $region70: #{tpu_custom_call.1} parent=1 // pred_check
      _
    $region71: #{tpu_custom_call.1} parent=1 // pred_check_branch
      %122 = sbr.rel (0) target = $region73
    $region72: #{tpu_custom_call.1} parent=1 // pred_region
      %123 = dma.done [#allocation10], 512
    $region73: #{tpu_custom_call.1} parent=1 // pred_fallthru
      _
    // Predicated region
    $region74: #{tpu_custom_call.1} parent=1 // pred_check
      _
    $region75: #{tpu_custom_call.1} parent=1 // pred_check_branch
      %125 = sbr.rel (0) target = $region77
    $region76: #{tpu_custom_call.1} parent=1 // pred_region
      %126 = dma.done [#allocation10], 512
    $region77: #{tpu_custom_call.1} parent=1 // pred_fallthru
      _
    // Predicated region
    $region78: #{tpu_custom_call.1} parent=1 // pred_check
      _
    $region79: #{tpu_custom_call.1} parent=1 // pred_check_branch
      %128 = sbr.rel (0) target = $region81
    $region80: #{tpu_custom_call.1} parent=1 // pred_region
      %129 = dma.done [#allocation13], 512
    $region81: #{tpu_custom_call.1} parent=1 // pred_fallthru
      _
    %v130 = vld [vmem:[#allocation3] sm:$0xff]
    %v131 = vld [vmem:[#allocation3 + $0x8] sm:$0xff]
    %v132 = vld [vmem:[#allocation3 + $0x10] sm:$0xff]
    %v133 = vld [vmem:[#allocation3 + $0x18] sm:$0xff]
    %v134 = vld [vmem:[#allocation3 + $0x20] sm:$0xff]
    %v135 = vld [vmem:[#allocation3 + $0x28] sm:$0xff]
    %v136 = vld [vmem:[#allocation3 + $0x30] sm:$0xff]
    %v137 = vld [vmem:[#allocation3 + $0x38] sm:$0xff]
    %v138 = vld [vmem:[#allocation3 + $0x40] sm:$0xff]
    %v139 = vld [vmem:[#allocation3 + $0x48] sm:$0xff]
    %v140 = vld [vmem:[#allocation3 + $0x50] sm:$0xff]
    %v141 = vld [vmem:[#allocation3 + $0x58] sm:$0xff]
    %v142 = vld [vmem:[#allocation6] sm:$0xff]
    %v143 = vld [vmem:[#allocation6 + $0x8] sm:$0xff]
    %v144 = vld [vmem:[#allocation6 + $0x10] sm:$0xff]
    %v145 = vld [vmem:[#allocation6 + $0x18] sm:$0xff]
    %v146 = vld [vmem:[%s3] sm:$0x1]
    %v148 = vlaneseq
    %v149 = vshrl.u32 %v148, 7
    %v150 = vsub.s32 0, %v149
    %v151 = vrot.slane %v146, %v150
    %vm153 = vcmask 261120
    %v155 = vsel %vm153, %v130, 0
    %v158 = vsel %vm153, %v131, 0
    %v161 = vsel %vm153, %v132, 0
    %v164 = vsel %vm153, %v133, 0
    %v167 = vsel %vm153, %v134, 0
    %v170 = vsel %vm153, %v135, 0
    %v173 = vsel %vm153, %v136, 0
    %v176 = vsel %vm153, %v137, 0
    %v179 = vsel %vm153, %v138, 0
    %v182 = vsel %vm153, %v139, 0
    %v185 = vsel %vm153, %v140, 0
    %v188 = vsel %vm153, %v141, 0
    %190 = vmatprep.subr.mxu0 0.0
    %191 = vmatpush1.msra.mxu0 %v142
    %192 = vmatprep.subr.mxu0 0.0
    %193 = vmatpush1.msra.mxu0 %v143
    %194 = vmatprep.subr.mxu0 0.0
    %195 = vmatpush1.msra.mxu0 %v144
    %196 = vmatprep.subr.mxu0 0.0
    %197 = vmatpush1.msra.mxu0 %v145
    %198 = vmatprep.subr.mxu0 0.0
    %199 = vmatpush1.msra.mxu0 0.0
    %200 = vmatprep.subr.mxu0 0.0
    %201 = vmatpush1.msra.mxu0 0.0
    %202 = vmatprep.subr.mxu0 0.0
    %203 = vmatpush1.msra.mxu0 0.0
    %204 = vmatprep.subr.mxu0 0.0
    %205 = vmatpush1.msra.mxu0 0.0
    %206 = vmatprep.subr.mxu0 0.0
    %207 = vmatpush1.msra.mxu0 0.0
    %208 = vmatprep.subr.mxu0 0.0
    %209 = vmatpush1.msra.mxu0 0.0
    %210 = vmatprep.subr.mxu0 0.0
    %211 = vmatpush1.msra.mxu0 0.0
    %212 = vmatprep.subr.mxu0 0.0
    %213 = vmatpush1.msra.mxu0 0.0
    %214 = vmatprep.subr.mxu0 0.0
    %215 = vmatpush1.msra.mxu0 0.0
    %216 = vmatprep.subr.mxu0 0.0
    %217 = vmatpush1.msra.mxu0 0.0
    %218 = vmatprep.subr.mxu0 0.0
    %219 = vmatpush1.msra.mxu0 0.0
    %220 = vmatprep.subr.mxu0 0.0
    %221 = vmatpush1.msra.mxu0 0.0
    %222 = vmatprep.subr.mxu0 0.0
    %223 = vmatpush1.msra.mxu0 0.0
    %224 = vmatprep.subr.mxu0 0.0
    %225 = vmatpush1.msra.mxu0 0.0
    %226 = vmatprep.subr.mxu0 0.0
    %227 = vmatpush1.msra.mxu0 0.0
    %228 = vmatprep.subr.mxu0 0.0
    %229 = vmatpush1.msra.mxu0 0.0
    %230 = vmatprep.subr.mxu0 0.0
    %231 = vmatpush1.msra.mxu0 0.0
    %232 = vmatprep.subr.mxu0 0.0
    %233 = vmatpush1.msra.mxu0 0.0
    %234 = vmatprep.subr.mxu0 0.0
    %235 = vmatpush1.msra.mxu0 0.0
    %236 = vmatprep.subr.mxu0 0.0
    %237 = vmatpush1.msra.mxu0 0.0
    %238 = vmatprep.subr.mxu0 0.0
    %239 = vmatpush1.msra.mxu0 0.0
    %240 = vmatprep.subr.mxu0 0.0
    %241 = vmatpush1.msra.mxu0 0.0
    %242 = vmatprep.subr.mxu0 0.0
    %243 = vmatpush1.msra.mxu0 0.0
    %244 = vmatprep.subr.mxu0 0.0
    %245 = vmatpush1.msra.mxu0 0.0
    %246 = vmatprep.subr.mxu0 0.0
    %247 = vmatpush1.msra.mxu0 0.0
    %248 = vmatprep.subr.mxu0 0.0
    %249 = vmatpush1.msra.mxu0 0.0
    %250 = vmatprep.subr.mxu0 0.0
    %251 = vmatpush1.msra.mxu0 0.0
    %252 = vmatprep.subr.mxu0 0.0
    %253 = vmatpush1.msra.mxu0 0.0
    %254 = vmatprep.mubr.f32.mxu0 0.0
    %255 = vmatmul.mubr.f32.gmra.mrb[0].mxu0 %v155
    %v256 = vpop.f32.mrb[0].mxu0
    %v257 = vadd.f32 %v151, %v256
    %v258 = vpop.f32.mrb[0].mxu0
    %259 = vmatprep.mubr.f32.mxu0 0.0
    %260 = vmatmul.mubr.f32.gmra.mrb[0].mxu0 %v158
    %v261 = vpop.f32.mrb[0].mxu0
    %v262 = vadd.f32 %v151, %v261
    %v263 = vpop.f32.mrb[0].mxu0
    %264 = vmatprep.mubr.f32.mxu0 0.0
    %265 = vmatmul.mubr.f32.gmra.mrb[0].mxu0 %v161
    %v266 = vpop.f32.mrb[0].mxu0
    %v267 = vadd.f32 %v151, %v266
    %v268 = vpop.f32.mrb[0].mxu0
    %269 = vmatprep.mubr.f32.mxu0 0.0
    %270 = vmatmul.mubr.f32.gmra.mrb[0].mxu0 %v164
    %v271 = vpop.f32.mrb[0].mxu0
    %v272 = vadd.f32 %v151, %v271
    %v273 = vpop.f32.mrb[0].mxu0
    %274 = vmatprep.mubr.f32.mxu0 0.0
    %275 = vmatmul.mubr.f32.gmra.mrb[0].mxu0 %v167
    %v276 = vpop.f32.mrb[0].mxu0
    %v277 = vadd.f32 %v151, %v276
    %v278 = vpop.f32.mrb[0].mxu0
    %279 = vmatprep.mubr.f32.mxu0 0.0
    %280 = vmatmul.mubr.f32.gmra.mrb[0].mxu0 %v170
    %v281 = vpop.f32.mrb[0].mxu0
    %v282 = vadd.f32 %v151, %v281
    %v283 = vpop.f32.mrb[0].mxu0
    %284 = vmatprep.mubr.f32.mxu0 0.0
    %285 = vmatmul.mubr.f32.gmra.mrb[0].mxu0 %v173
    %v286 = vpop.f32.mrb[0].mxu0
    %v287 = vadd.f32 %v151, %v286
    %v288 = vpop.f32.mrb[0].mxu0
    %289 = vmatprep.mubr.f32.mxu0 0.0
    %290 = vmatmul.mubr.f32.gmra.mrb[0].mxu0 %v176
    %v291 = vpop.f32.mrb[0].mxu0
    %v292 = vadd.f32 %v151, %v291
    %v293 = vpop.f32.mrb[0].mxu0
    %294 = vmatprep.mubr.f32.mxu0 0.0
    %295 = vmatmul.mubr.f32.gmra.mrb[0].mxu0 %v179
    %v296 = vpop.f32.mrb[0].mxu0
    %v297 = vadd.f32 %v151, %v296
    %v298 = vpop.f32.mrb[0].mxu0
    %299 = vmatprep.mubr.f32.mxu0 0.0
    %300 = vmatmul.mubr.f32.gmra.mrb[0].mxu0 %v182
    %v301 = vpop.f32.mrb[0].mxu0
    %v302 = vadd.f32 %v151, %v301
    %v303 = vpop.f32.mrb[0].mxu0
    %304 = vmatprep.mubr.f32.mxu0 0.0
    %305 = vmatmul.mubr.f32.gmra.mrb[0].mxu0 %v185
    %v306 = vpop.f32.mrb[0].mxu0
    %v307 = vadd.f32 %v151, %v306
    %v308 = vpop.f32.mrb[0].mxu0
    %309 = vmatprep.mubr.f32.mxu0 0.0
    %310 = vmatmul.mubr.f32.gmra.mrb[0].mxu0 %v188
    %v311 = vpop.f32.mrb[0].mxu0
    %v312 = vadd.f32 %v151, %v311
    %v313 = vpop.f32.mrb[0].mxu0
    %314 = vdwg.mxu0
    %315 = vst [vmem:[#allocation2] sm:$0xff] %v257
    %316 = vst [vmem:[#allocation2 + $0x8] sm:$0xff] %v262
    %317 = vst [vmem:[#allocation2 + $0x10] sm:$0xff] %v267
    %318 = vst [vmem:[#allocation2 + $0x18] sm:$0xff] %v272
    %319 = vst [vmem:[#allocation2 + $0x20] sm:$0xff] %v277
    %320 = vst [vmem:[#allocation2 + $0x28] sm:$0xff] %v282
    %321 = vst [vmem:[#allocation2 + $0x30] sm:$0xff] %v287
    %322 = vst [vmem:[#allocation2 + $0x38] sm:$0xff] %v292
    %323 = vst [vmem:[#allocation2 + $0x40] sm:$0xff] %v297
    %324 = vst [vmem:[#allocation2 + $0x48] sm:$0xff] %v302
    %325 = vst [vmem:[#allocation2 + $0x50] sm:$0xff] %v307
    %326 = vst [vmem:[#allocation2 + $0x58] sm:$0xff] %v312
    %v327 = vld [vmem:[%s4] sm:$0x1]
    %v329 = vlaneseq
    %v330 = vshrl.u32 %v329, 7
    %v331 = vsub.s32 0, %v330
    %v332 = vrot.slane %v327, %v331
    %v334 = vld [vmem:[%s7] sm:$0x1]
    %v336 = vlaneseq
    %v337 = vshrl.u32 %v336, 7
    %v338 = vsub.s32 0, %v337
    %v339 = vrot.slane %v334, %v338
    %v341 = vld [vmem:[%s8] sm:$0x1]
    %v343 = vlaneseq
    %v344 = vshrl.u32 %v343, 7
    %v345 = vsub.s32 0, %v344
    %v346 = vrot.slane %v341, %v345
    %v348 = vld [vmem:[#allocation2] sm:$0xff]
    %v349 = vld [vmem:[#allocation2 + $0x8] sm:$0xff]
    %v350 = vld [vmem:[#allocation2 + $0x10] sm:$0xff]
    %v351 = vld [vmem:[#allocation8] sm:$0xff]
    %v352 = vld [vmem:[#allocation8 + $0x8] sm:$0xff]
    %v353 = vld [vmem:[#allocation8 + $0x10] sm:$0xff]
    %v354 = vld [vmem:[#allocation8 + $0x18] sm:$0xff]
    %v356 = vsel %vm153, 0.0, 0
    %358 = vmatprep.subr.mxu0 0.0
    %359 = vmatpush1.msra.mxu0 %v351
    %360 = vmatprep.subr.mxu0 0.0
    %361 = vmatpush1.msra.mxu0 %v352
    %362 = vmatprep.subr.mxu0 0.0
    %363 = vmatpush1.msra.mxu0 %v353
    %364 = vmatprep.subr.mxu0 0.0
    %365 = vmatpush1.msra.mxu0 %v354
    %366 = vmatprep.subr.mxu0 0.0
    %367 = vmatpush1.msra.mxu0 0.0
    %368 = vmatprep.subr.mxu0 0.0
    %369 = vmatpush1.msra.mxu0 0.0
    %370 = vmatprep.subr.mxu0 0.0
    %371 = vmatpush1.msra.mxu0 0.0
    %372 = vmatprep.subr.mxu0 0.0
    %373 = vmatpush1.msra.mxu0 0.0
    %374 = vmatprep.subr.mxu0 0.0
    %375 = vmatpush1.msra.mxu0 0.0
    %376 = vmatprep.subr.mxu0 0.0
    %377 = vmatpush1.msra.mxu0 0.0
    %378 = vmatprep.subr.mxu0 0.0
    %379 = vmatpush1.msra.mxu0 0.0
    %380 = vmatprep.subr.mxu0 0.0
    %381 = vmatpush1.msra.mxu0 0.0
    %382 = vmatprep.subr.mxu0 0.0
    %383 = vmatpush1.msra.mxu0 0.0
    %384 = vmatprep.subr.mxu0 0.0
    %385 = vmatpush1.msra.mxu0 0.0
    %386 = vmatprep.subr.mxu0 0.0
    %387 = vmatpush1.msra.mxu0 0.0
    %388 = vmatprep.subr.mxu0 0.0
    %389 = vmatpush1.msra.mxu0 0.0
    %390 = vmatprep.subr.mxu0 0.0
    %391 = vmatpush1.msra.mxu0 0.0
    %392 = vmatprep.subr.mxu0 0.0
    %393 = vmatpush1.msra.mxu0 0.0
    %394 = vmatprep.subr.mxu0 0.0
    %395 = vmatpush1.msra.mxu0 0.0
    %396 = vmatprep.subr.mxu0 0.0
    %397 = vmatpush1.msra.mxu0 0.0
    %398 = vmatprep.subr.mxu0 0.0
    %399 = vmatpush1.msra.mxu0 0.0
    %400 = vmatprep.subr.mxu0 0.0
    %401 = vmatpush1.msra.mxu0 0.0
    %402 = vmatprep.subr.mxu0 0.0
    %403 = vmatpush1.msra.mxu0 0.0
    %404 = vmatprep.subr.mxu0 0.0
    %405 = vmatpush1.msra.mxu0 0.0
    %406 = vmatprep.subr.mxu0 0.0
    %407 = vmatpush1.msra.mxu0 0.0
    %408 = vmatprep.subr.mxu0 0.0
    %409 = vmatpush1.msra.mxu0 0.0
    %410 = vmatprep.subr.mxu0 0.0
    %411 = vmatpush1.msra.mxu0 0.0
    %412 = vmatprep.subr.mxu0 0.0
    %413 = vmatpush1.msra.mxu0 0.0
    %414 = vmatprep.subr.mxu0 0.0
    %415 = vmatpush1.msra.mxu0 0.0
    %416 = vmatprep.subr.mxu0 0.0
    %417 = vmatpush1.msra.mxu0 0.0
    %418 = vmatprep.subr.mxu0 0.0
    %419 = vmatpush1.msra.mxu0 0.0
    %420 = vmatprep.subr.mxu0 0.0
    %421 = vmatpush1.msra.mxu0 0.0
    %422 = vmatprep.mubr.f32.mxu0 0.0
    %423 = vmatmul.mubr.f32.gmra.mrb[0].mxu0 %v356
    %v424 = vpop.f32.mrb[0].mxu0
    %v425 = vadd.f32 %v332, %v424
    %v426 = vpop.f32.mrb[0].mxu0
    %427 = vmatprep.mubr.f32.mxu0 0.0
    %428 = vmatmul.mubr.f32.gmra.mrb[0].mxu0 %v356
    %v429 = vpop.f32.mrb[0].mxu0
    %v430 = vadd.f32 %v332, %v429
    %v431 = vpop.f32.mrb[0].mxu0
    %432 = vmatprep.mubr.f32.mxu0 0.0
    %433 = vmatmul.mubr.f32.gmra.mrb[0].mxu0 %v356
    %v434 = vpop.f32.mrb[0].mxu0
    %v435 = vadd.f32 %v332, %v434
    %v436 = vpop.f32.mrb[0].mxu0
    %437 = vdwg.mxu0
    %v438 = vadd.f32 %v348, %v425
    %v439 = vadd.f32 %v349, %v430
    %v440 = vadd.f32 %v350, %v435
    %v441 = vxor.u32 %v438, 2147483648
    %v442 = vxor.u32 %v439, 2147483648
    %v443 = vxor.u32 %v440, 2147483648
    %v444 = vmul.f32 %v441, 1.442695
    %v445 = vpow.pop %v444
    %v446 = vmul.f32 %v442, 1.442695
    %v447 = vpow.pop %v446
    %v448 = vmul.f32 %v443, 1.442695
    %v449 = vpow.pop %v448
    %v450 = vadd.f32 %v445, 1.0
    %v451 = vadd.f32 %v447, 1.0
    %v452 = vadd.f32 %v449, 1.0
    %v453 = vrcp.pop %v450
    %v454 = vmul.f32 1.0, %v453
    %v455 = vrcp.pop %v451
    %v456 = vmul.f32 1.0, %v455
    %v457 = vrcp.pop %v452
    %v458 = vmul.f32 1.0, %v457
    %462 = vrot.lane.b32.xlu0 %v425, 64
    %v463 = vpop.permute.xlu0 %462
    %464 = vrot.lane.b32.xlu0 %v430, 64
    %v465 = vpop.permute.xlu0 %464
    %466 = vrot.lane.b32.xlu0 %v435, 64
    %v467 = vpop.permute.xlu0 %466
    %v471 = vmul.f32 %v454, %v463
    %v472 = vmul.f32 %v456, %v465
    %v473 = vmul.f32 %v458, %v467
    %477 = vrot.lane.b32.xlu0 %v471, 64
    %v478 = vpop.permute.xlu0 %477
    %479 = vrot.lane.b32.xlu0 %v472, 64
    %v480 = vpop.permute.xlu0 %479
    %481 = vrot.lane.b32.xlu0 %v473, 64
    %v482 = vpop.permute.xlu0 %481
    %v486 = vadd.f32 %v348, %v478
    %v487 = vadd.f32 %v349, %v480
    %v488 = vadd.f32 %v350, %v482
    %v489 = vtanh.pop %v486
    %v490 = vtanh.pop %v487
    %v491 = vtanh.pop %v488
    %v492 = vsub.f32 1.0, %v454
    %v493 = vsub.f32 1.0, %v456
    %v494 = vsub.f32 1.0, %v458
    %498 = vrot.lane.b32.xlu0 %v489, 96
    %v499 = vpop.permute.xlu0 %498
    %500 = vrot.lane.b32.xlu0 %v490, 96
    %v501 = vpop.permute.xlu0 %500
    %502 = vrot.lane.b32.xlu0 %v491, 96
    %v503 = vpop.permute.xlu0 %502
    %v507 = vmul.f32 %v492, %v499
    %v508 = vmul.f32 %v493, %v501
    %v509 = vmul.f32 %v494, %v503
    %v510 = vmul.f32 %v454, 0.0
    %v511 = vmul.f32 %v456, 0.0
    %v512 = vmul.f32 %v458, 0.0
    %v513 = vadd.f32 %v507, %v510
    %v514 = vadd.f32 %v508, %v511
    %v515 = vadd.f32 %v509, %v512
    %v516 = vld [vmem:[#allocation9] sm:$0xff]
    %v517 = vld [vmem:[#allocation9 + $0x8] sm:$0xff]
    %v518 = vld [vmem:[#allocation9 + $0x10] sm:$0xff]
    %v519 = vld [vmem:[#allocation9 + $0x18] sm:$0xff]
    %523 = vrot.lane.b32.xlu0 %v513, 96
    %v524 = vpop.permute.xlu0 %523
    %525 = vrot.lane.b32.xlu0 %v514, 96
    %v526 = vpop.permute.xlu0 %525
    %527 = vrot.lane.b32.xlu0 %v515, 96
    %v528 = vpop.permute.xlu0 %527
    %v529 = vsel %vm153, %v524, 0
    %v531 = vsel %vm153, %v526, 0
    %v533 = vsel %vm153, %v528, 0
    %535 = vmatprep.subr.mxu0 0.0
    %536 = vmatpush1.msra.mxu0 %v516
    %537 = vmatprep.subr.mxu0 0.0
    %538 = vmatpush1.msra.mxu0 %v517
    %539 = vmatprep.subr.mxu0 0.0
    %540 = vmatpush1.msra.mxu0 %v518
    %541 = vmatprep.subr.mxu0 0.0
    %542 = vmatpush1.msra.mxu0 %v519
    %543 = vmatprep.subr.mxu0 0.0
    %544 = vmatpush1.msra.mxu0 0.0
    %545 = vmatprep.subr.mxu0 0.0
    %546 = vmatpush1.msra.mxu0 0.0
    %547 = vmatprep.subr.mxu0 0.0
    %548 = vmatpush1.msra.mxu0 0.0
    %549 = vmatprep.subr.mxu0 0.0
    %550 = vmatpush1.msra.mxu0 0.0
    %551 = vmatprep.subr.mxu0 0.0
    %552 = vmatpush1.msra.mxu0 0.0
    %553 = vmatprep.subr.mxu0 0.0
    %554 = vmatpush1.msra.mxu0 0.0
    %555 = vmatprep.subr.mxu0 0.0
    %556 = vmatpush1.msra.mxu0 0.0
    %557 = vmatprep.subr.mxu0 0.0
    %558 = vmatpush1.msra.mxu0 0.0
    %559 = vmatprep.subr.mxu0 0.0
    %560 = vmatpush1.msra.mxu0 0.0
    %561 = vmatprep.subr.mxu0 0.0
    %562 = vmatpush1.msra.mxu0 0.0
    %563 = vmatprep.subr.mxu0 0.0
    %564 = vmatpush1.msra.mxu0 0.0
    %565 = vmatprep.subr.mxu0 0.0
    %566 = vmatpush1.msra.mxu0 0.0
    %567 = vmatprep.subr.mxu0 0.0
    %568 = vmatpush1.msra.mxu0 0.0
    %569 = vmatprep.subr.mxu0 0.0
    %570 = vmatpush1.msra.mxu0 0.0
    %571 = vmatprep.subr.mxu0 0.0
    %572 = vmatpush1.msra.mxu0 0.0
    %573 = vmatprep.subr.mxu0 0.0
    %574 = vmatpush1.msra.mxu0 0.0
    %575 = vmatprep.subr.mxu0 0.0
    %576 = vmatpush1.msra.mxu0 0.0
    %577 = vmatprep.subr.mxu0 0.0
    %578 = vmatpush1.msra.mxu0 0.0
    %579 = vmatprep.subr.mxu0 0.0
    %580 = vmatpush1.msra.mxu0 0.0
    %581 = vmatprep.subr.mxu0 0.0
    %582 = vmatpush1.msra.mxu0 0.0
    %583 = vmatprep.subr.mxu0 0.0
    %584 = vmatpush1.msra.mxu0 0.0
    %585 = vmatprep.subr.mxu0 0.0
    %586 = vmatpush1.msra.mxu0 0.0
    %587 = vmatprep.subr.mxu0 0.0
    %588 = vmatpush1.msra.mxu0 0.0
    %589 = vmatprep.subr.mxu0 0.0
    %590 = vmatpush1.msra.mxu0 0.0
    %591 = vmatprep.subr.mxu0 0.0
    %592 = vmatpush1.msra.mxu0 0.0
    %593 = vmatprep.subr.mxu0 0.0
    %594 = vmatpush1.msra.mxu0 0.0
    %595 = vmatprep.subr.mxu0 0.0
    %596 = vmatpush1.msra.mxu0 0.0
    %597 = vmatprep.subr.mxu0 0.0
    %598 = vmatpush1.msra.mxu0 0.0
    %599 = vmatprep.mubr.f32.mxu0 0.0
    %600 = vmatmul.mubr.f32.gmra.mrb[0].mxu0 %v529
    %v601 = vpop.f32.mrb[0].mxu0
    %v602 = vadd.f32 %v339, %v601
    %v603 = vpop.f32.mrb[0].mxu0
    %604 = vmatprep.mubr.f32.mxu0 0.0
    %605 = vmatmul.mubr.f32.gmra.mrb[0].mxu0 %v531
    %v606 = vpop.f32.mrb[0].mxu0
    %v607 = vadd.f32 %v339, %v606
    %v608 = vpop.f32.mrb[0].mxu0
    %609 = vmatprep.mubr.f32.mxu0 0.0
    %610 = vmatmul.mubr.f32.gmra.mrb[0].mxu0 %v533
    %v611 = vpop.f32.mrb[0].mxu0
    %v612 = vadd.f32 %v339, %v611
    %v613 = vpop.f32.mrb[0].mxu0
    %614 = vdwg.mxu0
    %v615 = vld [vmem:[#allocation11] sm:$0xff]
    %v616 = vld [vmem:[#allocation11 + $0x8] sm:$0xff]
    %v617 = vld [vmem:[#allocation11 + $0x10] sm:$0xff]
    %v618 = vld [vmem:[#allocation11 + $0x18] sm:$0xff]
    %619 = vmatprep.subr.mxu0 0.0
    %620 = vmatpush1.msra.mxu0 %v615
    %621 = vmatprep.subr.mxu0 0.0
    %622 = vmatpush1.msra.mxu0 %v616
    %623 = vmatprep.subr.mxu0 0.0
    %624 = vmatpush1.msra.mxu0 %v617
    %625 = vmatprep.subr.mxu0 0.0
    %626 = vmatpush1.msra.mxu0 %v618
    %627 = vmatprep.subr.mxu0 0.0
    %628 = vmatpush1.msra.mxu0 0.0
    %629 = vmatprep.subr.mxu0 0.0
    %630 = vmatpush1.msra.mxu0 0.0
    %631 = vmatprep.subr.mxu0 0.0
    %632 = vmatpush1.msra.mxu0 0.0
    %633 = vmatprep.subr.mxu0 0.0
    %634 = vmatpush1.msra.mxu0 0.0
    %635 = vmatprep.subr.mxu0 0.0
    %636 = vmatpush1.msra.mxu0 0.0
    %637 = vmatprep.subr.mxu0 0.0
    %638 = vmatpush1.msra.mxu0 0.0
    %639 = vmatprep.subr.mxu0 0.0
    %640 = vmatpush1.msra.mxu0 0.0
    %641 = vmatprep.subr.mxu0 0.0
    %642 = vmatpush1.msra.mxu0 0.0
    %643 = vmatprep.subr.mxu0 0.0
    %644 = vmatpush1.msra.mxu0 0.0
    %645 = vmatprep.subr.mxu0 0.0
    %646 = vmatpush1.msra.mxu0 0.0
    %647 = vmatprep.subr.mxu0 0.0
    %648 = vmatpush1.msra.mxu0 0.0
    %649 = vmatprep.subr.mxu0 0.0
    %650 = vmatpush1.msra.mxu0 0.0
    %651 = vmatprep.subr.mxu0 0.0
    %652 = vmatpush1.msra.mxu0 0.0
    %653 = vmatprep.subr.mxu0 0.0
    %654 = vmatpush1.msra.mxu0 0.0
    %655 = vmatprep.subr.mxu0 0.0
    %656 = vmatpush1.msra.mxu0 0.0
    %657 = vmatprep.subr.mxu0 0.0
    %658 = vmatpush1.msra.mxu0 0.0
    %659 = vmatprep.subr.mxu0 0.0
    %660 = vmatpush1.msra.mxu0 0.0
    %661 = vmatprep.subr.mxu0 0.0
    %662 = vmatpush1.msra.mxu0 0.0
    %663 = vmatprep.subr.mxu0 0.0
    %664 = vmatpush1.msra.mxu0 0.0
    %665 = vmatprep.subr.mxu0 0.0
    %666 = vmatpush1.msra.mxu0 0.0
    %667 = vmatprep.subr.mxu0 0.0
    %668 = vmatpush1.msra.mxu0 0.0
    %669 = vmatprep.subr.mxu0 0.0
    %670 = vmatpush1.msra.mxu0 0.0
    %671 = vmatprep.subr.mxu0 0.0
    %672 = vmatpush1.msra.mxu0 0.0
    %673 = vmatprep.subr.mxu0 0.0
    %674 = vmatpush1.msra.mxu0 0.0
    %675 = vmatprep.subr.mxu0 0.0
    %676 = vmatpush1.msra.mxu0 0.0
    %677 = vmatprep.subr.mxu0 0.0
    %678 = vmatpush1.msra.mxu0 0.0
    %679 = vmatprep.subr.mxu0 0.0
    %680 = vmatpush1.msra.mxu0 0.0
    %681 = vmatprep.subr.mxu0 0.0
    %682 = vmatpush1.msra.mxu0 0.0
    %683 = vmatprep.mubr.f32.mxu0 0.0
    %684 = vmatmul.mubr.f32.gmra.mrb[0].mxu0 %v356
    %v685 = vpop.f32.mrb[0].mxu0
    %v686 = vadd.f32 %v346, %v685
    %v687 = vpop.f32.mrb[0].mxu0
    %688 = vmatprep.mubr.f32.mxu0 0.0
    %689 = vmatmul.mubr.f32.gmra.mrb[0].mxu0 %v356
    %v690 = vpop.f32.mrb[0].mxu0
    %v691 = vadd.f32 %v346, %v690
    %v692 = vpop.f32.mrb[0].mxu0
    %693 = vmatprep.mubr.f32.mxu0 0.0
    %694 = vmatmul.mubr.f32.gmra.mrb[0].mxu0 %v356
    %v695 = vpop.f32.mrb[0].mxu0
    %v696 = vadd.f32 %v346, %v695
    %v697 = vpop.f32.mrb[0].mxu0
    %698 = vdwg.mxu0
    %v699 = vadd.f32 %v602, %v686
    %v700 = vadd.f32 %v607, %v691
    %v701 = vadd.f32 %v612, %v696
    %v702 = vxor.u32 %v699, 2147483648
    %v703 = vxor.u32 %v700, 2147483648
    %v704 = vxor.u32 %v701, 2147483648
    %v705 = vmul.f32 %v702, 1.442695
    %v706 = vpow.pop %v705
    %v707 = vmul.f32 %v703, 1.442695
    %v708 = vpow.pop %v707
    %v709 = vmul.f32 %v704, 1.442695
    %v710 = vpow.pop %v709
    %v711 = vadd.f32 %v706, 1.0
    %v712 = vadd.f32 %v708, 1.0
    %v713 = vadd.f32 %v710, 1.0
    %v714 = vrcp.pop %v711
    %v715 = vmul.f32 1.0, %v714
    %v716 = vrcp.pop %v712
    %v717 = vmul.f32 1.0, %v716
    %v718 = vrcp.pop %v713
    %v719 = vmul.f32 1.0, %v718
    %723 = vrot.lane.b32.xlu0 %v686, 64
    %v724 = vpop.permute.xlu0 %723
    %725 = vrot.lane.b32.xlu0 %v691, 64
    %v726 = vpop.permute.xlu0 %725
    %727 = vrot.lane.b32.xlu0 %v696, 64
    %v728 = vpop.permute.xlu0 %727
    %v732 = vmul.f32 %v715, %v724
    %v733 = vmul.f32 %v717, %v726
    %v734 = vmul.f32 %v719, %v728
    %738 = vrot.lane.b32.xlu0 %v732, 64
    %v739 = vpop.permute.xlu0 %738
    %740 = vrot.lane.b32.xlu0 %v733, 64
    %v741 = vpop.permute.xlu0 %740
    %742 = vrot.lane.b32.xlu0 %v734, 64
    %v743 = vpop.permute.xlu0 %742
    %v747 = vadd.f32 %v602, %v739
    %v748 = vadd.f32 %v607, %v741
    %v749 = vadd.f32 %v612, %v743
    %v750 = vtanh.pop %v747
    %v751 = vtanh.pop %v748
    %v752 = vtanh.pop %v749
    %v753 = vsub.f32 1.0, %v715
    %v754 = vsub.f32 1.0, %v717
    %v755 = vsub.f32 1.0, %v719
    %759 = vrot.lane.b32.xlu0 %v750, 96
    %v760 = vpop.permute.xlu0 %759
    %761 = vrot.lane.b32.xlu0 %v751, 96
    %v762 = vpop.permute.xlu0 %761
    %763 = vrot.lane.b32.xlu0 %v752, 96
    %v764 = vpop.permute.xlu0 %763
    %v768 = vmul.f32 %v753, %v760
    %v769 = vmul.f32 %v754, %v762
    %v770 = vmul.f32 %v755, %v764
    %v771 = vmul.f32 %v715, 0.0
    %v772 = vmul.f32 %v717, 0.0
    %v773 = vmul.f32 %v719, 0.0
    %v774 = vadd.f32 %v768, %v771
    %v775 = vadd.f32 %v769, %v772
    %v776 = vadd.f32 %v770, %v773
    %s777 = scalar_lea.vmem [#allocation2], 24
    %v778 = vld [vmem:[%s777] sm:$0xff]
    %v779 = vld [vmem:[%s777 + $0x8] sm:$0xff]
    %v780 = vld [vmem:[%s777 + $0x10] sm:$0xff]
    %781 = vmatprep.subr.mxu0 0.0
    %782 = vmatpush1.msra.mxu0 %v351
    %783 = vmatprep.subr.mxu0 0.0
    %784 = vmatpush1.msra.mxu0 %v352
    %785 = vmatprep.subr.mxu0 0.0
    %786 = vmatpush1.msra.mxu0 %v353
    %787 = vmatprep.subr.mxu0 0.0
    %788 = vmatpush1.msra.mxu0 %v354
    %789 = vmatprep.subr.mxu0 0.0
    %790 = vmatpush1.msra.mxu0 0.0
    %791 = vmatprep.subr.mxu0 0.0
    %792 = vmatpush1.msra.mxu0 0.0
    %793 = vmatprep.subr.mxu0 0.0
    %794 = vmatpush1.msra.mxu0 0.0
    %795 = vmatprep.subr.mxu0 0.0
    %796 = vmatpush1.msra.mxu0 0.0
    %797 = vmatprep.subr.mxu0 0.0
    %798 = vmatpush1.msra.mxu0 0.0
    %799 = vmatprep.subr.mxu0 0.0
    %800 = vmatpush1.msra.mxu0 0.0
    %801 = vmatprep.subr.mxu0 0.0
    %802 = vmatpush1.msra.mxu0 0.0
    %803 = vmatprep.subr.mxu0 0.0
    %804 = vmatpush1.msra.mxu0 0.0
    %805 = vmatprep.subr.mxu0 0.0
    %806 = vmatpush1.msra.mxu0 0.0
    %807 = vmatprep.subr.mxu0 0.0
    %808 = vmatpush1.msra.mxu0 0.0
    %809 = vmatprep.subr.mxu0 0.0
    %810 = vmatpush1.msra.mxu0 0.0
    %811 = vmatprep.subr.mxu0 0.0
    %812 = vmatpush1.msra.mxu0 0.0
    %813 = vmatprep.subr.mxu0 0.0
    %814 = vmatpush1.msra.mxu0 0.0
    %815 = vmatprep.subr.mxu0 0.0
    %816 = vmatpush1.msra.mxu0 0.0
    %817 = vmatprep.subr.mxu0 0.0
    %818 = vmatpush1.msra.mxu0 0.0
    %819 = vmatprep.subr.mxu0 0.0
    %820 = vmatpush1.msra.mxu0 0.0
    %821 = vmatprep.subr.mxu0 0.0
    %822 = vmatpush1.msra.mxu0 0.0
    %823 = vmatprep.subr.mxu0 0.0
    %824 = vmatpush1.msra.mxu0 0.0
    %825 = vmatprep.subr.mxu0 0.0
    %826 = vmatpush1.msra.mxu0 0.0
    %827 = vmatprep.subr.mxu0 0.0
    %828 = vmatpush1.msra.mxu0 0.0
    %829 = vmatprep.subr.mxu0 0.0
    %830 = vmatpush1.msra.mxu0 0.0
    %831 = vmatprep.subr.mxu0 0.0
    %832 = vmatpush1.msra.mxu0 0.0
    %833 = vmatprep.subr.mxu0 0.0
    %834 = vmatpush1.msra.mxu0 0.0
    %835 = vmatprep.subr.mxu0 0.0
    %836 = vmatpush1.msra.mxu0 0.0
    %837 = vmatprep.subr.mxu0 0.0
    %838 = vmatpush1.msra.mxu0 0.0
    %839 = vmatprep.subr.mxu0 0.0
    %840 = vmatpush1.msra.mxu0 0.0
    %841 = vmatprep.subr.mxu0 0.0
    %842 = vmatpush1.msra.mxu0 0.0
    %843 = vmatprep.subr.mxu0 0.0
    %844 = vmatpush1.msra.mxu0 0.0
    %845 = vmatprep.mubr.f32.mxu0 0.0
    %846 = vmatmul.mubr.f32.gmra.mrb[0].mxu0 %v529
    %v847 = vpop.f32.mrb[0].mxu0
    %v848 = vadd.f32 %v332, %v847
    %v849 = vpop.f32.mrb[0].mxu0
    %850 = vmatprep.mubr.f32.mxu0 0.0
    %851 = vmatmul.mubr.f32.gmra.mrb[0].mxu0 %v531
    %v852 = vpop.f32.mrb[0].mxu0
    %v853 = vadd.f32 %v332, %v852
    %v854 = vpop.f32.mrb[0].mxu0
    %855 = vmatprep.mubr.f32.mxu0 0.0
    %856 = vmatmul.mubr.f32.gmra.mrb[0].mxu0 %v533
    %v857 = vpop.f32.mrb[0].mxu0
    %v858 = vadd.f32 %v332, %v857
    %v859 = vpop.f32.mrb[0].mxu0
    %860 = vdwg.mxu0
    %v861 = vadd.f32 %v778, %v848
    %v862 = vadd.f32 %v779, %v853
    %v863 = vadd.f32 %v780, %v858
    %v864 = vxor.u32 %v861, 2147483648
    %v865 = vxor.u32 %v862, 2147483648
    %v866 = vxor.u32 %v863, 2147483648
    %v867 = vmul.f32 %v864, 1.442695
    %v868 = vpow.pop %v867
    %v869 = vmul.f32 %v865, 1.442695
    %v870 = vpow.pop %v869
    %v871 = vmul.f32 %v866, 1.442695
    %v872 = vpow.pop %v871
    %v873 = vadd.f32 %v868, 1.0
    %v874 = vadd.f32 %v870, 1.0
    %v875 = vadd.f32 %v872, 1.0
    %v876 = vrcp.pop %v873
    %v877 = vmul.f32 1.0, %v876
    %v878 = vrcp.pop %v874
    %v879 = vmul.f32 1.0, %v878
    %v880 = vrcp.pop %v875
    %v881 = vmul.f32 1.0, %v880
    %885 = vrot.lane.b32.xlu0 %v848, 64
    %v886 = vpop.permute.xlu0 %885
    %887 = vrot.lane.b32.xlu0 %v853, 64
    %v888 = vpop.permute.xlu0 %887
    %889 = vrot.lane.b32.xlu0 %v858, 64
    %v890 = vpop.permute.xlu0 %889
    %v894 = vmul.f32 %v877, %v886
    %v895 = vmul.f32 %v879, %v888
    %v896 = vmul.f32 %v881, %v890
    %900 = vrot.lane.b32.xlu0 %v894, 64
    %v901 = vpop.permute.xlu0 %900
    %902 = vrot.lane.b32.xlu0 %v895, 64
    %v903 = vpop.permute.xlu0 %902
    %904 = vrot.lane.b32.xlu0 %v896, 64
    %v905 = vpop.permute.xlu0 %904
    %v909 = vadd.f32 %v778, %v901
    %v910 = vadd.f32 %v779, %v903
    %v911 = vadd.f32 %v780, %v905
    %v912 = vtanh.pop %v909
    %v913 = vtanh.pop %v910
    %v914 = vtanh.pop %v911
    %v915 = vsub.f32 1.0, %v877
    %v916 = vsub.f32 1.0, %v879
    %v917 = vsub.f32 1.0, %v881
    %921 = vrot.lane.b32.xlu0 %v912, 96
    %v922 = vpop.permute.xlu0 %921
    %923 = vrot.lane.b32.xlu0 %v913, 96
    %v924 = vpop.permute.xlu0 %923
    %925 = vrot.lane.b32.xlu0 %v914, 96
    %v926 = vpop.permute.xlu0 %925
    %v930 = vmul.f32 %v915, %v922
    %v931 = vmul.f32 %v916, %v924
    %v932 = vmul.f32 %v917, %v926
    %v933 = vmul.f32 %v877, %v513
    %v934 = vmul.f32 %v879, %v514
    %v935 = vmul.f32 %v881, %v515
    %v936 = vadd.f32 %v930, %v933
    %v937 = vadd.f32 %v931, %v934
    %v938 = vadd.f32 %v932, %v935
    %942 = vrot.lane.b32.xlu0 %v936, 96
    %v943 = vpop.permute.xlu0 %942
    %944 = vrot.lane.b32.xlu0 %v937, 96
    %v945 = vpop.permute.xlu0 %944
    %946 = vrot.lane.b32.xlu0 %v938, 96
    %v947 = vpop.permute.xlu0 %946
    %v948 = vsel %vm153, %v943, 0
    %v950 = vsel %vm153, %v945, 0
    %v952 = vsel %vm153, %v947, 0
    %954 = vmatprep.subr.mxu0 0.0
    %955 = vmatpush1.msra.mxu0 %v516
    %956 = vmatprep.subr.mxu0 0.0
    %957 = vmatpush1.msra.mxu0 %v517
    %958 = vmatprep.subr.mxu0 0.0
    %959 = vmatpush1.msra.mxu0 %v518
    %960 = vmatprep.subr.mxu0 0.0
    %961 = vmatpush1.msra.mxu0 %v519
    %962 = vmatprep.subr.mxu0 0.0
    %963 = vmatpush1.msra.mxu0 0.0
    %964 = vmatprep.subr.mxu0 0.0
    %965 = vmatpush1.msra.mxu0 0.0
    %966 = vmatprep.subr.mxu0 0.0
    %967 = vmatpush1.msra.mxu0 0.0
    %968 = vmatprep.subr.mxu0 0.0
    %969 = vmatpush1.msra.mxu0 0.0
    %970 = vmatprep.subr.mxu0 0.0
    %971 = vmatpush1.msra.mxu0 0.0
    %972 = vmatprep.subr.mxu0 0.0
    %973 = vmatpush1.msra.mxu0 0.0
    %974 = vmatprep.subr.mxu0 0.0
    %975 = vmatpush1.msra.mxu0 0.0
    %976 = vmatprep.subr.mxu0 0.0
    %977 = vmatpush1.msra.mxu0 0.0
    %978 = vmatprep.subr.mxu0 0.0
    %979 = vmatpush1.msra.mxu0 0.0
    %980 = vmatprep.subr.mxu0 0.0
    %981 = vmatpush1.msra.mxu0 0.0
    %982 = vmatprep.subr.mxu0 0.0
    %983 = vmatpush1.msra.mxu0 0.0
    %984 = vmatprep.subr.mxu0 0.0
    %985 = vmatpush1.msra.mxu0 0.0
    %986 = vmatprep.subr.mxu0 0.0
    %987 = vmatpush1.msra.mxu0 0.0
    %988 = vmatprep.subr.mxu0 0.0
    %989 = vmatpush1.msra.mxu0 0.0
    %990 = vmatprep.subr.mxu0 0.0
    %991 = vmatpush1.msra.mxu0 0.0
    %992 = vmatprep.subr.mxu0 0.0
    %993 = vmatpush1.msra.mxu0 0.0
    %994 = vmatprep.subr.mxu0 0.0
    %995 = vmatpush1.msra.mxu0 0.0
    %996 = vmatprep.subr.mxu0 0.0
    %997 = vmatpush1.msra.mxu0 0.0
    %998 = vmatprep.subr.mxu0 0.0
    %999 = vmatpush1.msra.mxu0 0.0
    %1000 = vmatprep.subr.mxu0 0.0
    %1001 = vmatpush1.msra.mxu0 0.0
    %1002 = vmatprep.subr.mxu0 0.0
    %1003 = vmatpush1.msra.mxu0 0.0
    %1004 = vmatprep.subr.mxu0 0.0
    %1005 = vmatpush1.msra.mxu0 0.0
    %1006 = vmatprep.subr.mxu0 0.0
    %1007 = vmatpush1.msra.mxu0 0.0
    %1008 = vmatprep.subr.mxu0 0.0
    %1009 = vmatpush1.msra.mxu0 0.0
    %1010 = vmatprep.subr.mxu0 0.0
    %1011 = vmatpush1.msra.mxu0 0.0
    %1012 = vmatprep.subr.mxu0 0.0
    %1013 = vmatpush1.msra.mxu0 0.0
    %1014 = vmatprep.subr.mxu0 0.0
    %1015 = vmatpush1.msra.mxu0 0.0
    %1016 = vmatprep.subr.mxu0 0.0
    %1017 = vmatpush1.msra.mxu0 0.0
    %1018 = vmatprep.mubr.f32.mxu0 0.0
    %1019 = vmatmul.mubr.f32.gmra.mrb[0].mxu0 %v948
    %v1020 = vpop.f32.mrb[0].mxu0
    %v1021 = vadd.f32 %v339, %v1020
    %v1022 = vpop.f32.mrb[0].mxu0
    %1023 = vmatprep.mubr.f32.mxu0 0.0
    %1024 = vmatmul.mubr.f32.gmra.mrb[0].mxu0 %v950
    %v1025 = vpop.f32.mrb[0].mxu0
    %v1026 = vadd.f32 %v339, %v1025
    %v1027 = vpop.f32.mrb[0].mxu0
    %1028 = vmatprep.mubr.f32.mxu0 0.0
    %1029 = vmatmul.mubr.f32.gmra.mrb[0].mxu0 %v952
    %v1030 = vpop.f32.mrb[0].mxu0
    %v1031 = vadd.f32 %v339, %v1030
    %v1032 = vpop.f32.mrb[0].mxu0
    %1033 = vdwg.mxu0
    %1037 = vrot.lane.b32.xlu0 %v774, 96
    %v1038 = vpop.permute.xlu0 %1037
    %1039 = vrot.lane.b32.xlu0 %v775, 96
    %v1040 = vpop.permute.xlu0 %1039
    %1041 = vrot.lane.b32.xlu0 %v776, 96
    %v1042 = vpop.permute.xlu0 %1041
    %v1043 = vsel %vm153, %v1038, 0
    %v1045 = vsel %vm153, %v1040, 0
    %v1047 = vsel %vm153, %v1042, 0
    %1049 = vmatprep.subr.mxu0 0.0
    %1050 = vmatpush1.msra.mxu0 %v615
    %1051 = vmatprep.subr.mxu0 0.0
    %1052 = vmatpush1.msra.mxu0 %v616
    %1053 = vmatprep.subr.mxu0 0.0
    %1054 = vmatpush1.msra.mxu0 %v617
    %1055 = vmatprep.subr.mxu0 0.0
    %1056 = vmatpush1.msra.mxu0 %v618
    %1057 = vmatprep.subr.mxu0 0.0
    %1058 = vmatpush1.msra.mxu0 0.0
    %1059 = vmatprep.subr.mxu0 0.0
    %1060 = vmatpush1.msra.mxu0 0.0
    %1061 = vmatprep.subr.mxu0 0.0
    %1062 = vmatpush1.msra.mxu0 0.0
    %1063 = vmatprep.subr.mxu0 0.0
    %1064 = vmatpush1.msra.mxu0 0.0
    %1065 = vmatprep.subr.mxu0 0.0
    %1066 = vmatpush1.msra.mxu0 0.0
    %1067 = vmatprep.subr.mxu0 0.0
    %1068 = vmatpush1.msra.mxu0 0.0
    %1069 = vmatprep.subr.mxu0 0.0
    %1070 = vmatpush1.msra.mxu0 0.0
    %1071 = vmatprep.subr.mxu0 0.0
    %1072 = vmatpush1.msra.mxu0 0.0
    %1073 = vmatprep.subr.mxu0 0.0
    %1074 = vmatpush1.msra.mxu0 0.0
    %1075 = vmatprep.subr.mxu0 0.0
    %1076 = vmatpush1.msra.mxu0 0.0
    %1077 = vmatprep.subr.mxu0 0.0
    %1078 = vmatpush1.msra.mxu0 0.0
    %1079 = vmatprep.subr.mxu0 0.0
    %1080 = vmatpush1.msra.mxu0 0.0
    %1081 = vmatprep.subr.mxu0 0.0
    %1082 = vmatpush1.msra.mxu0 0.0
    %1083 = vmatprep.subr.mxu0 0.0
    %1084 = vmatpush1.msra.mxu0 0.0
    %1085 = vmatprep.subr.mxu0 0.0
    %1086 = vmatpush1.msra.mxu0 0.0
    %1087 = vmatprep.subr.mxu0 0.0
    %1088 = vmatpush1.msra.mxu0 0.0
    %1089 = vmatprep.subr.mxu0 0.0
    %1090 = vmatpush1.msra.mxu0 0.0
    %1091 = vmatprep.subr.mxu0 0.0
    %1092 = vmatpush1.msra.mxu0 0.0
    %1093 = vmatprep.subr.mxu0 0.0
    %1094 = vmatpush1.msra.mxu0 0.0
    %1095 = vmatprep.subr.mxu0 0.0
    %1096 = vmatpush1.msra.mxu0 0.0
    %1097 = vmatprep.subr.mxu0 0.0
    %1098 = vmatpush1.msra.mxu0 0.0
    %1099 = vmatprep.subr.mxu0 0.0
    %1100 = vmatpush1.msra.mxu0 0.0
    %1101 = vmatprep.subr.mxu0 0.0
    %1102 = vmatpush1.msra.mxu0 0.0
    %1103 = vmatprep.subr.mxu0 0.0
    %1104 = vmatpush1.msra.mxu0 0.0
    %1105 = vmatprep.subr.mxu0 0.0
    %1106 = vmatpush1.msra.mxu0 0.0
    %1107 = vmatprep.subr.mxu0 0.0
    %1108 = vmatpush1.msra.mxu0 0.0
    %1109 = vmatprep.subr.mxu0 0.0
    %1110 = vmatpush1.msra.mxu0 0.0
    %1111 = vmatprep.subr.mxu0 0.0
    %1112 = vmatpush1.msra.mxu0 0.0
    %1113 = vmatprep.mubr.f32.mxu0 0.0
    %1114 = vmatmul.mubr.f32.gmra.mrb[0].mxu0 %v1043
    %v1115 = vpop.f32.mrb[0].mxu0
    %v1116 = vadd.f32 %v346, %v1115
    %v1117 = vpop.f32.mrb[0].mxu0
    %1118 = vmatprep.mubr.f32.mxu0 0.0
    %1119 = vmatmul.mubr.f32.gmra.mrb[0].mxu0 %v1045
    %v1120 = vpop.f32.mrb[0].mxu0
    %v1121 = vadd.f32 %v346, %v1120
    %v1122 = vpop.f32.mrb[0].mxu0
    %1123 = vmatprep.mubr.f32.mxu0 0.0
    %1124 = vmatmul.mubr.f32.gmra.mrb[0].mxu0 %v1047
    %v1125 = vpop.f32.mrb[0].mxu0
    %v1126 = vadd.f32 %v346, %v1125
    %v1127 = vpop.f32.mrb[0].mxu0
    %1128 = vdwg.mxu0
    %v1129 = vadd.f32 %v1021, %v1116
    %v1130 = vadd.f32 %v1026, %v1121
    %v1131 = vadd.f32 %v1031, %v1126
    %v1132 = vxor.u32 %v1129, 2147483648
    %v1133 = vxor.u32 %v1130, 2147483648
    %v1134 = vxor.u32 %v1131, 2147483648
    %v1135 = vmul.f32 %v1132, 1.442695
    %v1136 = vpow.pop %v1135
    %v1137 = vmul.f32 %v1133, 1.442695
    %v1138 = vpow.pop %v1137
    %v1139 = vmul.f32 %v1134, 1.442695
    %v1140 = vpow.pop %v1139
    %v1141 = vadd.f32 %v1136, 1.0
    %v1142 = vadd.f32 %v1138, 1.0
    %v1143 = vadd.f32 %v1140, 1.0
    %v1144 = vrcp.pop %v1141
    %v1145 = vmul.f32 1.0, %v1144
    %v1146 = vrcp.pop %v1142
    %v1147 = vmul.f32 1.0, %v1146
    %v1148 = vrcp.pop %v1143
    %v1149 = vmul.f32 1.0, %v1148
    %1153 = vrot.lane.b32.xlu0 %v1116, 64
    %v1154 = vpop.permute.xlu0 %1153
    %1155 = vrot.lane.b32.xlu0 %v1121, 64
    %v1156 = vpop.permute.xlu0 %1155
    %1157 = vrot.lane.b32.xlu0 %v1126, 64
    %v1158 = vpop.permute.xlu0 %1157
    %v1162 = vmul.f32 %v1145, %v1154
    %v1163 = vmul.f32 %v1147, %v1156
    %v1164 = vmul.f32 %v1149, %v1158
    %1168 = vrot.lane.b32.xlu0 %v1162, 64
    %v1169 = vpop.permute.xlu0 %1168
    %1170 = vrot.lane.b32.xlu0 %v1163, 64
    %v1171 = vpop.permute.xlu0 %1170
    %1172 = vrot.lane.b32.xlu0 %v1164, 64
    %v1173 = vpop.permute.xlu0 %1172
    %v1177 = vadd.f32 %v1021, %v1169
    %v1178 = vadd.f32 %v1026, %v1171
    %v1179 = vadd.f32 %v1031, %v1173
    %v1180 = vtanh.pop %v1177
    %v1181 = vtanh.pop %v1178
    %v1182 = vtanh.pop %v1179
    %v1183 = vsub.f32 1.0, %v1145
    %v1184 = vsub.f32 1.0, %v1147
    %v1185 = vsub.f32 1.0, %v1149
    %1189 = vrot.lane.b32.xlu0 %v1180, 96
    %v1190 = vpop.permute.xlu0 %1189
    %1191 = vrot.lane.b32.xlu0 %v1181, 96
    %v1192 = vpop.permute.xlu0 %1191
    %1193 = vrot.lane.b32.xlu0 %v1182, 96
    %v1194 = vpop.permute.xlu0 %1193
    %v1198 = vmul.f32 %v1183, %v1190
    %v1199 = vmul.f32 %v1184, %v1192
    %v1200 = vmul.f32 %v1185, %v1194
    %v1201 = vmul.f32 %v1145, %v774
    %v1202 = vmul.f32 %v1147, %v775
    %v1203 = vmul.f32 %v1149, %v776
    %v1204 = vadd.f32 %v1198, %v1201
    %v1205 = vadd.f32 %v1199, %v1202
    %v1206 = vadd.f32 %v1200, %v1203
    %s1207 = scalar_lea.vmem [#allocation2], 48
    %v1208 = vld [vmem:[%s1207] sm:$0xff]
    %v1209 = vld [vmem:[%s1207 + $0x8] sm:$0xff]
    %v1210 = vld [vmem:[%s1207 + $0x10] sm:$0xff]
    %1211 = vmatprep.subr.mxu0 0.0
    %1212 = vmatpush1.msra.mxu0 %v351
    %1213 = vmatprep.subr.mxu0 0.0
    %1214 = vmatpush1.msra.mxu0 %v352
    %1215 = vmatprep.subr.mxu0 0.0
    %1216 = vmatpush1.msra.mxu0 %v353
    %1217 = vmatprep.subr.mxu0 0.0
    %1218 = vmatpush1.msra.mxu0 %v354
    %1219 = vmatprep.subr.mxu0 0.0
    %1220 = vmatpush1.msra.mxu0 0.0
    %1221 = vmatprep.subr.mxu0 0.0
    %1222 = vmatpush1.msra.mxu0 0.0
    %1223 = vmatprep.subr.mxu0 0.0
    %1224 = vmatpush1.msra.mxu0 0.0
    %1225 = vmatprep.subr.mxu0 0.0
    %1226 = vmatpush1.msra.mxu0 0.0
    %1227 = vmatprep.subr.mxu0 0.0
    %1228 = vmatpush1.msra.mxu0 0.0
    %1229 = vmatprep.subr.mxu0 0.0
    %1230 = vmatpush1.msra.mxu0 0.0
    %1231 = vmatprep.subr.mxu0 0.0
    %1232 = vmatpush1.msra.mxu0 0.0
    %1233 = vmatprep.subr.mxu0 0.0
    %1234 = vmatpush1.msra.mxu0 0.0
    %1235 = vmatprep.subr.mxu0 0.0
    %1236 = vmatpush1.msra.mxu0 0.0
    %1237 = vmatprep.subr.mxu0 0.0
    %1238 = vmatpush1.msra.mxu0 0.0
    %1239 = vmatprep.subr.mxu0 0.0
    %1240 = vmatpush1.msra.mxu0 0.0
    %1241 = vmatprep.subr.mxu0 0.0
    %1242 = vmatpush1.msra.mxu0 0.0
    %1243 = vmatprep.subr.mxu0 0.0
    %1244 = vmatpush1.msra.mxu0 0.0
    %1245 = vmatprep.subr.mxu0 0.0
    %1246 = vmatpush1.msra.mxu0 0.0
    %1247 = vmatprep.subr.mxu0 0.0
    %1248 = vmatpush1.msra.mxu0 0.0
    %1249 = vmatprep.subr.mxu0 0.0
    %1250 = vmatpush1.msra.mxu0 0.0
    %1251 = vmatprep.subr.mxu0 0.0
    %1252 = vmatpush1.msra.mxu0 0.0
    %1253 = vmatprep.subr.mxu0 0.0
    %1254 = vmatpush1.msra.mxu0 0.0
    %1255 = vmatprep.subr.mxu0 0.0
    %1256 = vmatpush1.msra.mxu0 0.0
    %1257 = vmatprep.subr.mxu0 0.0
    %1258 = vmatpush1.msra.mxu0 0.0
    %1259 = vmatprep.subr.mxu0 0.0
    %1260 = vmatpush1.msra.mxu0 0.0
    %1261 = vmatprep.subr.mxu0 0.0
    %1262 = vmatpush1.msra.mxu0 0.0
    %1263 = vmatprep.subr.mxu0 0.0
    %1264 = vmatpush1.msra.mxu0 0.0
    %1265 = vmatprep.subr.mxu0 0.0
    %1266 = vmatpush1.msra.mxu0 0.0
    %1267 = vmatprep.subr.mxu0 0.0
    %1268 = vmatpush1.msra.mxu0 0.0
    %1269 = vmatprep.subr.mxu0 0.0
    %1270 = vmatpush1.msra.mxu0 0.0
    %1271 = vmatprep.subr.mxu0 0.0
    %1272 = vmatpush1.msra.mxu0 0.0
    %1273 = vmatprep.subr.mxu0 0.0
    %1274 = vmatpush1.msra.mxu0 0.0
    %1275 = vmatprep.mubr.f32.mxu0 0.0
    %1276 = vmatmul.mubr.f32.gmra.mrb[0].mxu0 %v948
    %v1277 = vpop.f32.mrb[0].mxu0
    %v1278 = vadd.f32 %v332, %v1277
    %v1279 = vpop.f32.mrb[0].mxu0
    %1280 = vmatprep.mubr.f32.mxu0 0.0
    %1281 = vmatmul.mubr.f32.gmra.mrb[0].mxu0 %v950
    %v1282 = vpop.f32.mrb[0].mxu0
    %v1283 = vadd.f32 %v332, %v1282
    %v1284 = vpop.f32.mrb[0].mxu0
    %1285 = vmatprep.mubr.f32.mxu0 0.0
    %1286 = vmatmul.mubr.f32.gmra.mrb[0].mxu0 %v952
    %v1287 = vpop.f32.mrb[0].mxu0
    %v1288 = vadd.f32 %v332, %v1287
    %v1289 = vpop.f32.mrb[0].mxu0
    %1290 = vdwg.mxu0
    %v1291 = vadd.f32 %v1208, %v1278
    %v1292 = vadd.f32 %v1209, %v1283
    %v1293 = vadd.f32 %v1210, %v1288
    %v1294 = vxor.u32 %v1291, 2147483648
    %v1295 = vxor.u32 %v1292, 2147483648
    %v1296 = vxor.u32 %v1293, 2147483648
    %v1297 = vmul.f32 %v1294, 1.442695
    %v1298 = vpow.pop %v1297
    %v1299 = vmul.f32 %v1295, 1.442695
    %v1300 = vpow.pop %v1299
    %v1301 = vmul.f32 %v1296, 1.442695
    %v1302 = vpow.pop %v1301
    %v1303 = vadd.f32 %v1298, 1.0
    %v1304 = vadd.f32 %v1300, 1.0
    %v1305 = vadd.f32 %v1302, 1.0
    %v1306 = vrcp.pop %v1303
    %v1307 = vmul.f32 1.0, %v1306
    %v1308 = vrcp.pop %v1304
    %v1309 = vmul.f32 1.0, %v1308
    %v1310 = vrcp.pop %v1305
    %v1311 = vmul.f32 1.0, %v1310
    %1315 = vrot.lane.b32.xlu0 %v1278, 64
    %v1316 = vpop.permute.xlu0 %1315
    %1317 = vrot.lane.b32.xlu0 %v1283, 64
    %v1318 = vpop.permute.xlu0 %1317
    %1319 = vrot.lane.b32.xlu0 %v1288, 64
    %v1320 = vpop.permute.xlu0 %1319
    %v1324 = vmul.f32 %v1307, %v1316
    %v1325 = vmul.f32 %v1309, %v1318
    %v1326 = vmul.f32 %v1311, %v1320
    %1330 = vrot.lane.b32.xlu0 %v1324, 64
    %v1331 = vpop.permute.xlu0 %1330
    %1332 = vrot.lane.b32.xlu0 %v1325, 64
    %v1333 = vpop.permute.xlu0 %1332
    %1334 = vrot.lane.b32.xlu0 %v1326, 64
    %v1335 = vpop.permute.xlu0 %1334
    %v1339 = vadd.f32 %v1208, %v1331
    %v1340 = vadd.f32 %v1209, %v1333
    %v1341 = vadd.f32 %v1210, %v1335
    %v1342 = vtanh.pop %v1339
    %v1343 = vtanh.pop %v1340
    %v1344 = vtanh.pop %v1341
    %v1345 = vsub.f32 1.0, %v1307
    %v1346 = vsub.f32 1.0, %v1309
    %v1347 = vsub.f32 1.0, %v1311
    %1351 = vrot.lane.b32.xlu0 %v1342, 96
    %v1352 = vpop.permute.xlu0 %1351
    %1353 = vrot.lane.b32.xlu0 %v1343, 96
    %v1354 = vpop.permute.xlu0 %1353
    %1355 = vrot.lane.b32.xlu0 %v1344, 96
    %v1356 = vpop.permute.xlu0 %1355
    %v1360 = vmul.f32 %v1345, %v1352
    %v1361 = vmul.f32 %v1346, %v1354
    %v1362 = vmul.f32 %v1347, %v1356
    %v1363 = vmul.f32 %v1307, %v936
    %v1364 = vmul.f32 %v1309, %v937
    %v1365 = vmul.f32 %v1311, %v938
    %v1366 = vadd.f32 %v1360, %v1363
    %v1367 = vadd.f32 %v1361, %v1364
    %v1368 = vadd.f32 %v1362, %v1365
    %1372 = vrot.lane.b32.xlu0 %v1366, 96
    %v1373 = vpop.permute.xlu0 %1372
    %1374 = vrot.lane.b32.xlu0 %v1367, 96
    %v1375 = vpop.permute.xlu0 %1374
    %1376 = vrot.lane.b32.xlu0 %v1368, 96
    %v1377 = vpop.permute.xlu0 %1376
    %v1378 = vsel %vm153, %v1373, 0
    %v1380 = vsel %vm153, %v1375, 0
    %v1382 = vsel %vm153, %v1377, 0
    %1384 = vmatprep.subr.mxu0 0.0
    %1385 = vmatpush1.msra.mxu0 %v516
    %1386 = vmatprep.subr.mxu0 0.0
    %1387 = vmatpush1.msra.mxu0 %v517
    %1388 = vmatprep.subr.mxu0 0.0
    %1389 = vmatpush1.msra.mxu0 %v518
    %1390 = vmatprep.subr.mxu0 0.0
    %1391 = vmatpush1.msra.mxu0 %v519
    %1392 = vmatprep.subr.mxu0 0.0
    %1393 = vmatpush1.msra.mxu0 0.0
    %1394 = vmatprep.subr.mxu0 0.0
    %1395 = vmatpush1.msra.mxu0 0.0
    %1396 = vmatprep.subr.mxu0 0.0
    %1397 = vmatpush1.msra.mxu0 0.0
    %1398 = vmatprep.subr.mxu0 0.0
    %1399 = vmatpush1.msra.mxu0 0.0
    %1400 = vmatprep.subr.mxu0 0.0
    %1401 = vmatpush1.msra.mxu0 0.0
    %1402 = vmatprep.subr.mxu0 0.0
    %1403 = vmatpush1.msra.mxu0 0.0
    %1404 = vmatprep.subr.mxu0 0.0
    %1405 = vmatpush1.msra.mxu0 0.0
    %1406 = vmatprep.subr.mxu0 0.0
    %1407 = vmatpush1.msra.mxu0 0.0
    %1408 = vmatprep.subr.mxu0 0.0
    %1409 = vmatpush1.msra.mxu0 0.0
    %1410 = vmatprep.subr.mxu0 0.0
    %1411 = vmatpush1.msra.mxu0 0.0
    %1412 = vmatprep.subr.mxu0 0.0
    %1413 = vmatpush1.msra.mxu0 0.0
    %1414 = vmatprep.subr.mxu0 0.0
    %1415 = vmatpush1.msra.mxu0 0.0
    %1416 = vmatprep.subr.mxu0 0.0
    %1417 = vmatpush1.msra.mxu0 0.0
    %1418 = vmatprep.subr.mxu0 0.0
    %1419 = vmatpush1.msra.mxu0 0.0
    %1420 = vmatprep.subr.mxu0 0.0
    %1421 = vmatpush1.msra.mxu0 0.0
    %1422 = vmatprep.subr.mxu0 0.0
    %1423 = vmatpush1.msra.mxu0 0.0
    %1424 = vmatprep.subr.mxu0 0.0
    %1425 = vmatpush1.msra.mxu0 0.0
    %1426 = vmatprep.subr.mxu0 0.0
    %1427 = vmatpush1.msra.mxu0 0.0
    %1428 = vmatprep.subr.mxu0 0.0
    %1429 = vmatpush1.msra.mxu0 0.0
    %1430 = vmatprep.subr.mxu0 0.0
    %1431 = vmatpush1.msra.mxu0 0.0
    %1432 = vmatprep.subr.mxu0 0.0
    %1433 = vmatpush1.msra.mxu0 0.0
    %1434 = vmatprep.subr.mxu0 0.0
    %1435 = vmatpush1.msra.mxu0 0.0
    %1436 = vmatprep.subr.mxu0 0.0
    %1437 = vmatpush1.msra.mxu0 0.0
    %1438 = vmatprep.subr.mxu0 0.0
    %1439 = vmatpush1.msra.mxu0 0.0
    %1440 = vmatprep.subr.mxu0 0.0
    %1441 = vmatpush1.msra.mxu0 0.0
    %1442 = vmatprep.subr.mxu0 0.0
    %1443 = vmatpush1.msra.mxu0 0.0
    %1444 = vmatprep.subr.mxu0 0.0
    %1445 = vmatpush1.msra.mxu0 0.0
    %1446 = vmatprep.subr.mxu0 0.0
    %1447 = vmatpush1.msra.mxu0 0.0
    %1448 = vmatprep.mubr.f32.mxu0 0.0
    %1449 = vmatmul.mubr.f32.gmra.mrb[0].mxu0 %v1378
    %v1450 = vpop.f32.mrb[0].mxu0
    %v1451 = vadd.f32 %v339, %v1450
    %v1452 = vpop.f32.mrb[0].mxu0
    %1453 = vmatprep.mubr.f32.mxu0 0.0
    %1454 = vmatmul.mubr.f32.gmra.mrb[0].mxu0 %v1380
    %v1455 = vpop.f32.mrb[0].mxu0
    %v1456 = vadd.f32 %v339, %v1455
    %v1457 = vpop.f32.mrb[0].mxu0
    %1458 = vmatprep.mubr.f32.mxu0 0.0
    %1459 = vmatmul.mubr.f32.gmra.mrb[0].mxu0 %v1382
    %v1460 = vpop.f32.mrb[0].mxu0
    %v1461 = vadd.f32 %v339, %v1460
    %v1462 = vpop.f32.mrb[0].mxu0
    %1463 = vdwg.mxu0
    %1467 = vrot.lane.b32.xlu0 %v1204, 96
    %v1468 = vpop.permute.xlu0 %1467
    %1469 = vrot.lane.b32.xlu0 %v1205, 96
    %v1470 = vpop.permute.xlu0 %1469
    %1471 = vrot.lane.b32.xlu0 %v1206, 96
    %v1472 = vpop.permute.xlu0 %1471
    %v1473 = vsel %vm153, %v1468, 0
    %v1475 = vsel %vm153, %v1470, 0
    %v1477 = vsel %vm153, %v1472, 0
    %1479 = vmatprep.subr.mxu0 0.0
    %1480 = vmatpush1.msra.mxu0 %v615
    %1481 = vmatprep.subr.mxu0 0.0
    %1482 = vmatpush1.msra.mxu0 %v616
    %1483 = vmatprep.subr.mxu0 0.0
    %1484 = vmatpush1.msra.mxu0 %v617
    %1485 = vmatprep.subr.mxu0 0.0
    %1486 = vmatpush1.msra.mxu0 %v618
    %1487 = vmatprep.subr.mxu0 0.0
    %1488 = vmatpush1.msra.mxu0 0.0
    %1489 = vmatprep.subr.mxu0 0.0
    %1490 = vmatpush1.msra.mxu0 0.0
    %1491 = vmatprep.subr.mxu0 0.0
    %1492 = vmatpush1.msra.mxu0 0.0
    %1493 = vmatprep.subr.mxu0 0.0
    %1494 = vmatpush1.msra.mxu0 0.0
    %1495 = vmatprep.subr.mxu0 0.0
    %1496 = vmatpush1.msra.mxu0 0.0
    %1497 = vmatprep.subr.mxu0 0.0
    %1498 = vmatpush1.msra.mxu0 0.0
    %1499 = vmatprep.subr.mxu0 0.0
    %1500 = vmatpush1.msra.mxu0 0.0
    %1501 = vmatprep.subr.mxu0 0.0
    %1502 = vmatpush1.msra.mxu0 0.0
    %1503 = vmatprep.subr.mxu0 0.0
    %1504 = vmatpush1.msra.mxu0 0.0
    %1505 = vmatprep.subr.mxu0 0.0
    %1506 = vmatpush1.msra.mxu0 0.0
    %1507 = vmatprep.subr.mxu0 0.0
    %1508 = vmatpush1.msra.mxu0 0.0
    %1509 = vmatprep.subr.mxu0 0.0
    %1510 = vmatpush1.msra.mxu0 0.0
    %1511 = vmatprep.subr.mxu0 0.0
    %1512 = vmatpush1.msra.mxu0 0.0
    %1513 = vmatprep.subr.mxu0 0.0
    %1514 = vmatpush1.msra.mxu0 0.0
    %1515 = vmatprep.subr.mxu0 0.0
    %1516 = vmatpush1.msra.mxu0 0.0
    %1517 = vmatprep.subr.mxu0 0.0
    %1518 = vmatpush1.msra.mxu0 0.0
    %1519 = vmatprep.subr.mxu0 0.0
    %1520 = vmatpush1.msra.mxu0 0.0
    %1521 = vmatprep.subr.mxu0 0.0
    %1522 = vmatpush1.msra.mxu0 0.0
    %1523 = vmatprep.subr.mxu0 0.0
    %1524 = vmatpush1.msra.mxu0 0.0
    %1525 = vmatprep.subr.mxu0 0.0
    %1526 = vmatpush1.msra.mxu0 0.0
    %1527 = vmatprep.subr.mxu0 0.0
    %1528 = vmatpush1.msra.mxu0 0.0
    %1529 = vmatprep.subr.mxu0 0.0
    %1530 = vmatpush1.msra.mxu0 0.0
    %1531 = vmatprep.subr.mxu0 0.0
    %1532 = vmatpush1.msra.mxu0 0.0
    %1533 = vmatprep.subr.mxu0 0.0
    %1534 = vmatpush1.msra.mxu0 0.0
    %1535 = vmatprep.subr.mxu0 0.0
    %1536 = vmatpush1.msra.mxu0 0.0
    %1537 = vmatprep.subr.mxu0 0.0
    %1538 = vmatpush1.msra.mxu0 0.0
    %1539 = vmatprep.subr.mxu0 0.0
    %1540 = vmatpush1.msra.mxu0 0.0
    %1541 = vmatprep.subr.mxu0 0.0
    %1542 = vmatpush1.msra.mxu0 0.0
    %1543 = vmatprep.mubr.f32.mxu0 0.0
    %1544 = vmatmul.mubr.f32.gmra.mrb[0].mxu0 %v1473
    %v1545 = vpop.f32.mrb[0].mxu0
    %v1546 = vadd.f32 %v346, %v1545
    %v1547 = vpop.f32.mrb[0].mxu0
    %1548 = vmatprep.mubr.f32.mxu0 0.0
    %1549 = vmatmul.mubr.f32.gmra.mrb[0].mxu0 %v1475
    %v1550 = vpop.f32.mrb[0].mxu0
    %v1551 = vadd.f32 %v346, %v1550
    %v1552 = vpop.f32.mrb[0].mxu0
    %1553 = vmatprep.mubr.f32.mxu0 0.0
    %1554 = vmatmul.mubr.f32.gmra.mrb[0].mxu0 %v1477
    %v1555 = vpop.f32.mrb[0].mxu0
    %v1556 = vadd.f32 %v346, %v1555
    %v1557 = vpop.f32.mrb[0].mxu0
    %1558 = vdwg.mxu0
    %v1559 = vadd.f32 %v1451, %v1546
    %v1560 = vadd.f32 %v1456, %v1551
    %v1561 = vadd.f32 %v1461, %v1556
    %v1562 = vxor.u32 %v1559, 2147483648
    %v1563 = vxor.u32 %v1560, 2147483648
    %v1564 = vxor.u32 %v1561, 2147483648
    %v1565 = vmul.f32 %v1562, 1.442695
    %v1566 = vpow.pop %v1565
    %v1567 = vmul.f32 %v1563, 1.442695
    %v1568 = vpow.pop %v1567
    %v1569 = vmul.f32 %v1564, 1.442695
    %v1570 = vpow.pop %v1569
    %v1571 = vadd.f32 %v1566, 1.0
    %v1572 = vadd.f32 %v1568, 1.0
    %v1573 = vadd.f32 %v1570, 1.0
    %v1574 = vrcp.pop %v1571
    %v1575 = vmul.f32 1.0, %v1574
    %v1576 = vrcp.pop %v1572
    %v1577 = vmul.f32 1.0, %v1576
    %v1578 = vrcp.pop %v1573
    %v1579 = vmul.f32 1.0, %v1578
    %1583 = vrot.lane.b32.xlu0 %v1546, 64
    %v1584 = vpop.permute.xlu0 %1583
    %1585 = vrot.lane.b32.xlu0 %v1551, 64
    %v1586 = vpop.permute.xlu0 %1585
    %1587 = vrot.lane.b32.xlu0 %v1556, 64
    %v1588 = vpop.permute.xlu0 %1587
    %v1592 = vmul.f32 %v1575, %v1584
    %v1593 = vmul.f32 %v1577, %v1586
    %v1594 = vmul.f32 %v1579, %v1588
    %1598 = vrot.lane.b32.xlu0 %v1592, 64
    %v1599 = vpop.permute.xlu0 %1598
    %1600 = vrot.lane.b32.xlu0 %v1593, 64
    %v1601 = vpop.permute.xlu0 %1600
    %1602 = vrot.lane.b32.xlu0 %v1594, 64
    %v1603 = vpop.permute.xlu0 %1602
    %v1607 = vadd.f32 %v1451, %v1599
    %v1608 = vadd.f32 %v1456, %v1601
    %v1609 = vadd.f32 %v1461, %v1603
    %v1610 = vtanh.pop %v1607
    %v1611 = vtanh.pop %v1608
    %v1612 = vtanh.pop %v1609
    %v1613 = vsub.f32 1.0, %v1575
    %v1614 = vsub.f32 1.0, %v1577
    %v1615 = vsub.f32 1.0, %v1579
    %1619 = vrot.lane.b32.xlu0 %v1610, 96
    %v1620 = vpop.permute.xlu0 %1619
    %1621 = vrot.lane.b32.xlu0 %v1611, 96
    %v1622 = vpop.permute.xlu0 %1621
    %1623 = vrot.lane.b32.xlu0 %v1612, 96
    %v1624 = vpop.permute.xlu0 %1623
    %v1628 = vmul.f32 %v1613, %v1620
    %v1629 = vmul.f32 %v1614, %v1622
    %v1630 = vmul.f32 %v1615, %v1624
    %v1631 = vmul.f32 %v1575, %v1204
    %v1632 = vmul.f32 %v1577, %v1205
    %v1633 = vmul.f32 %v1579, %v1206
    %v1634 = vadd.f32 %v1628, %v1631
    %v1635 = vadd.f32 %v1629, %v1632
    %v1636 = vadd.f32 %v1630, %v1633
    %s1637 = scalar_lea.vmem [#allocation2], 72
    %v1638 = vld [vmem:[%s1637] sm:$0xff]
    %v1639 = vld [vmem:[%s1637 + $0x8] sm:$0xff]
    %v1640 = vld [vmem:[%s1637 + $0x10] sm:$0xff]
    %1641 = vmatprep.subr.mxu0 0.0
    %1642 = vmatpush1.msra.mxu0 %v351
    %1643 = vmatprep.subr.mxu0 0.0
    %1644 = vmatpush1.msra.mxu0 %v352
    %1645 = vmatprep.subr.mxu0 0.0
    %1646 = vmatpush1.msra.mxu0 %v353
    %1647 = vmatprep.subr.mxu0 0.0
    %1648 = vmatpush1.msra.mxu0 %v354
    %1649 = vmatprep.subr.mxu0 0.0
    %1650 = vmatpush1.msra.mxu0 0.0
    %1651 = vmatprep.subr.mxu0 0.0
    %1652 = vmatpush1.msra.mxu0 0.0
    %1653 = vmatprep.subr.mxu0 0.0
    %1654 = vmatpush1.msra.mxu0 0.0
    %1655 = vmatprep.subr.mxu0 0.0
    %1656 = vmatpush1.msra.mxu0 0.0
    %1657 = vmatprep.subr.mxu0 0.0
    %1658 = vmatpush1.msra.mxu0 0.0
    %1659 = vmatprep.subr.mxu0 0.0
    %1660 = vmatpush1.msra.mxu0 0.0
    %1661 = vmatprep.subr.mxu0 0.0
    %1662 = vmatpush1.msra.mxu0 0.0
    %1663 = vmatprep.subr.mxu0 0.0
    %1664 = vmatpush1.msra.mxu0 0.0
    %1665 = vmatprep.subr.mxu0 0.0
    %1666 = vmatpush1.msra.mxu0 0.0
    %1667 = vmatprep.subr.mxu0 0.0
    %1668 = vmatpush1.msra.mxu0 0.0
    %1669 = vmatprep.subr.mxu0 0.0
    %1670 = vmatpush1.msra.mxu0 0.0
    %1671 = vmatprep.subr.mxu0 0.0
    %1672 = vmatpush1.msra.mxu0 0.0
    %1673 = vmatprep.subr.mxu0 0.0
    %1674 = vmatpush1.msra.mxu0 0.0
    %1675 = vmatprep.subr.mxu0 0.0
    %1676 = vmatpush1.msra.mxu0 0.0
    %1677 = vmatprep.subr.mxu0 0.0
    %1678 = vmatpush1.msra.mxu0 0.0
    %1679 = vmatprep.subr.mxu0 0.0
    %1680 = vmatpush1.msra.mxu0 0.0
    %1681 = vmatprep.subr.mxu0 0.0
    %1682 = vmatpush1.msra.mxu0 0.0
    %1683 = vmatprep.subr.mxu0 0.0
    %1684 = vmatpush1.msra.mxu0 0.0
    %1685 = vmatprep.subr.mxu0 0.0
    %1686 = vmatpush1.msra.mxu0 0.0
    %1687 = vmatprep.subr.mxu0 0.0
    %1688 = vmatpush1.msra.mxu0 0.0
    %1689 = vmatprep.subr.mxu0 0.0
    %1690 = vmatpush1.msra.mxu0 0.0
    %1691 = vmatprep.subr.mxu0 0.0
    %1692 = vmatpush1.msra.mxu0 0.0
    %1693 = vmatprep.subr.mxu0 0.0
    %1694 = vmatpush1.msra.mxu0 0.0
    %1695 = vmatprep.subr.mxu0 0.0
    %1696 = vmatpush1.msra.mxu0 0.0
    %1697 = vmatprep.subr.mxu0 0.0
    %1698 = vmatpush1.msra.mxu0 0.0
    %1699 = vmatprep.subr.mxu0 0.0
    %1700 = vmatpush1.msra.mxu0 0.0
    %1701 = vmatprep.subr.mxu0 0.0
    %1702 = vmatpush1.msra.mxu0 0.0
    %1703 = vmatprep.subr.mxu0 0.0
    %1704 = vmatpush1.msra.mxu0 0.0
    %1705 = vmatprep.mubr.f32.mxu0 0.0
    %1706 = vmatmul.mubr.f32.gmra.mrb[0].mxu0 %v1378
    %v1707 = vpop.f32.mrb[0].mxu0
    %v1708 = vadd.f32 %v332, %v1707
    %v1709 = vpop.f32.mrb[0].mxu0
    %1710 = vmatprep.mubr.f32.mxu0 0.0
    %1711 = vmatmul.mubr.f32.gmra.mrb[0].mxu0 %v1380
    %v1712 = vpop.f32.mrb[0].mxu0
    %v1713 = vadd.f32 %v332, %v1712
    %v1714 = vpop.f32.mrb[0].mxu0
    %1715 = vmatprep.mubr.f32.mxu0 0.0
    %1716 = vmatmul.mubr.f32.gmra.mrb[0].mxu0 %v1382
    %v1717 = vpop.f32.mrb[0].mxu0
    %v1718 = vadd.f32 %v332, %v1717
    %v1719 = vpop.f32.mrb[0].mxu0
    %1720 = vdwg.mxu0
    %v1721 = vadd.f32 %v1638, %v1708
    %v1722 = vadd.f32 %v1639, %v1713
    %v1723 = vadd.f32 %v1640, %v1718
    %v1724 = vxor.u32 %v1721, 2147483648
    %v1725 = vxor.u32 %v1722, 2147483648
    %v1726 = vxor.u32 %v1723, 2147483648
    %v1727 = vmul.f32 %v1724, 1.442695
    %v1728 = vpow.pop %v1727
    %v1729 = vmul.f32 %v1725, 1.442695
    %v1730 = vpow.pop %v1729
    %v1731 = vmul.f32 %v1726, 1.442695
    %v1732 = vpow.pop %v1731
    %v1733 = vadd.f32 %v1728, 1.0
    %v1734 = vadd.f32 %v1730, 1.0
    %v1735 = vadd.f32 %v1732, 1.0
    %v1736 = vrcp.pop %v1733
    %v1737 = vmul.f32 1.0, %v1736
    %v1738 = vrcp.pop %v1734
    %v1739 = vmul.f32 1.0, %v1738
    %v1740 = vrcp.pop %v1735
    %v1741 = vmul.f32 1.0, %v1740
    %1745 = vrot.lane.b32.xlu0 %v1708, 64
    %v1746 = vpop.permute.xlu0 %1745
    %1747 = vrot.lane.b32.xlu0 %v1713, 64
    %v1748 = vpop.permute.xlu0 %1747
    %1749 = vrot.lane.b32.xlu0 %v1718, 64
    %v1750 = vpop.permute.xlu0 %1749
    %v1754 = vmul.f32 %v1737, %v1746
    %v1755 = vmul.f32 %v1739, %v1748
    %v1756 = vmul.f32 %v1741, %v1750
    %1760 = vrot.lane.b32.xlu0 %v1754, 64
    %v1761 = vpop.permute.xlu0 %1760
    %1762 = vrot.lane.b32.xlu0 %v1755, 64
    %v1763 = vpop.permute.xlu0 %1762
    %1764 = vrot.lane.b32.xlu0 %v1756, 64
    %v1765 = vpop.permute.xlu0 %1764
    %v1769 = vadd.f32 %v1638, %v1761
    %v1770 = vadd.f32 %v1639, %v1763
    %v1771 = vadd.f32 %v1640, %v1765
    %v1772 = vtanh.pop %v1769
    %v1773 = vtanh.pop %v1770
    %v1774 = vtanh.pop %v1771
    %v1775 = vsub.f32 1.0, %v1737
    %v1776 = vsub.f32 1.0, %v1739
    %v1777 = vsub.f32 1.0, %v1741
    %1781 = vrot.lane.b32.xlu0 %v1772, 96
    %v1782 = vpop.permute.xlu0 %1781
    %1783 = vrot.lane.b32.xlu0 %v1773, 96
    %v1784 = vpop.permute.xlu0 %1783
    %1785 = vrot.lane.b32.xlu0 %v1774, 96
    %v1786 = vpop.permute.xlu0 %1785
    %v1790 = vmul.f32 %v1775, %v1782
    %v1791 = vmul.f32 %v1776, %v1784
    %v1792 = vmul.f32 %v1777, %v1786
    %v1793 = vmul.f32 %v1737, %v1366
    %v1794 = vmul.f32 %v1739, %v1367
    %v1795 = vmul.f32 %v1741, %v1368
    %v1796 = vadd.f32 %v1790, %v1793
    %v1797 = vadd.f32 %v1791, %v1794
    %v1798 = vadd.f32 %v1792, %v1795
    %1802 = vrot.lane.b32.xlu0 %v1796, 96
    %v1803 = vpop.permute.xlu0 %1802
    %1804 = vrot.lane.b32.xlu0 %v1797, 96
    %v1805 = vpop.permute.xlu0 %1804
    %1806 = vrot.lane.b32.xlu0 %v1798, 96
    %v1807 = vpop.permute.xlu0 %1806
    %v1808 = vsel %vm153, %v1803, 0
    %v1810 = vsel %vm153, %v1805, 0
    %v1812 = vsel %vm153, %v1807, 0
    %1814 = vmatprep.subr.mxu0 0.0
    %1815 = vmatpush1.msra.mxu0 %v516
    %1816 = vmatprep.subr.mxu0 0.0
    %1817 = vmatpush1.msra.mxu0 %v517
    %1818 = vmatprep.subr.mxu0 0.0
    %1819 = vmatpush1.msra.mxu0 %v518
    %1820 = vmatprep.subr.mxu0 0.0
    %1821 = vmatpush1.msra.mxu0 %v519
    %1822 = vmatprep.subr.mxu0 0.0
    %1823 = vmatpush1.msra.mxu0 0.0
    %1824 = vmatprep.subr.mxu0 0.0
    %1825 = vmatpush1.msra.mxu0 0.0
    %1826 = vmatprep.subr.mxu0 0.0
    %1827 = vmatpush1.msra.mxu0 0.0
    %1828 = vmatprep.subr.mxu0 0.0
    %1829 = vmatpush1.msra.mxu0 0.0
    %1830 = vmatprep.subr.mxu0 0.0
    %1831 = vmatpush1.msra.mxu0 0.0
    %1832 = vmatprep.subr.mxu0 0.0
    %1833 = vmatpush1.msra.mxu0 0.0
    %1834 = vmatprep.subr.mxu0 0.0
    %1835 = vmatpush1.msra.mxu0 0.0
    %1836 = vmatprep.subr.mxu0 0.0
    %1837 = vmatpush1.msra.mxu0 0.0
    %1838 = vmatprep.subr.mxu0 0.0
    %1839 = vmatpush1.msra.mxu0 0.0
    %1840 = vmatprep.subr.mxu0 0.0
    %1841 = vmatpush1.msra.mxu0 0.0
    %1842 = vmatprep.subr.mxu0 0.0
    %1843 = vmatpush1.msra.mxu0 0.0
    %1844 = vmatprep.subr.mxu0 0.0
    %1845 = vmatpush1.msra.mxu0 0.0
    %1846 = vmatprep.subr.mxu0 0.0
    %1847 = vmatpush1.msra.mxu0 0.0
    %1848 = vmatprep.subr.mxu0 0.0
    %1849 = vmatpush1.msra.mxu0 0.0
    %1850 = vmatprep.subr.mxu0 0.0
    %1851 = vmatpush1.msra.mxu0 0.0
    %1852 = vmatprep.subr.mxu0 0.0
    %1853 = vmatpush1.msra.mxu0 0.0
    %1854 = vmatprep.subr.mxu0 0.0
    %1855 = vmatpush1.msra.mxu0 0.0
    %1856 = vmatprep.subr.mxu0 0.0
    %1857 = vmatpush1.msra.mxu0 0.0
    %1858 = vmatprep.subr.mxu0 0.0
    %1859 = vmatpush1.msra.mxu0 0.0
    %1860 = vmatprep.subr.mxu0 0.0
    %1861 = vmatpush1.msra.mxu0 0.0
    %1862 = vmatprep.subr.mxu0 0.0
    %1863 = vmatpush1.msra.mxu0 0.0
    %1864 = vmatprep.subr.mxu0 0.0
    %1865 = vmatpush1.msra.mxu0 0.0
    %1866 = vmatprep.subr.mxu0 0.0
    %1867 = vmatpush1.msra.mxu0 0.0
    %1868 = vmatprep.subr.mxu0 0.0
    %1869 = vmatpush1.msra.mxu0 0.0
    %1870 = vmatprep.subr.mxu0 0.0
    %1871 = vmatpush1.msra.mxu0 0.0
    %1872 = vmatprep.subr.mxu0 0.0
    %1873 = vmatpush1.msra.mxu0 0.0
    %1874 = vmatprep.subr.mxu0 0.0
    %1875 = vmatpush1.msra.mxu0 0.0
    %1876 = vmatprep.subr.mxu0 0.0
    %1877 = vmatpush1.msra.mxu0 0.0
    %1878 = vmatprep.mubr.f32.mxu0 0.0
    %1879 = vmatmul.mubr.f32.gmra.mrb[0].mxu0 %v1808
    %v1880 = vpop.f32.mrb[0].mxu0
    %v1881 = vadd.f32 %v339, %v1880
    %v1882 = vpop.f32.mrb[0].mxu0
    %1883 = vmatprep.mubr.f32.mxu0 0.0
    %1884 = vmatmul.mubr.f32.gmra.mrb[0].mxu0 %v1810
    %v1885 = vpop.f32.mrb[0].mxu0
    %v1886 = vadd.f32 %v339, %v1885
    %v1887 = vpop.f32.mrb[0].mxu0
    %1888 = vmatprep.mubr.f32.mxu0 0.0
    %1889 = vmatmul.mubr.f32.gmra.mrb[0].mxu0 %v1812
    %v1890 = vpop.f32.mrb[0].mxu0
    %v1891 = vadd.f32 %v339, %v1890
    %v1892 = vpop.f32.mrb[0].mxu0
    %1893 = vdwg.mxu0
    %1897 = vrot.lane.b32.xlu0 %v1634, 96
    %v1898 = vpop.permute.xlu0 %1897
    %1899 = vrot.lane.b32.xlu0 %v1635, 96
    %v1900 = vpop.permute.xlu0 %1899
    %1901 = vrot.lane.b32.xlu0 %v1636, 96
    %v1902 = vpop.permute.xlu0 %1901
    %v1903 = vsel %vm153, %v1898, 0
    %v1905 = vsel %vm153, %v1900, 0
    %v1907 = vsel %vm153, %v1902, 0
    %1909 = vmatprep.subr.mxu0 0.0
    %1910 = vmatpush1.msra.mxu0 %v615
    %1911 = vmatprep.subr.mxu0 0.0
    %1912 = vmatpush1.msra.mxu0 %v616
    %1913 = vmatprep.subr.mxu0 0.0
    %1914 = vmatpush1.msra.mxu0 %v617
    %1915 = vmatprep.subr.mxu0 0.0
    %1916 = vmatpush1.msra.mxu0 %v618
    %1917 = vmatprep.subr.mxu0 0.0
    %1918 = vmatpush1.msra.mxu0 0.0
    %1919 = vmatprep.subr.mxu0 0.0
    %1920 = vmatpush1.msra.mxu0 0.0
    %1921 = vmatprep.subr.mxu0 0.0
    %1922 = vmatpush1.msra.mxu0 0.0
    %1923 = vmatprep.subr.mxu0 0.0
    %1924 = vmatpush1.msra.mxu0 0.0
    %1925 = vmatprep.subr.mxu0 0.0
    %1926 = vmatpush1.msra.mxu0 0.0
    %1927 = vmatprep.subr.mxu0 0.0
    %1928 = vmatpush1.msra.mxu0 0.0
    %1929 = vmatprep.subr.mxu0 0.0
    %1930 = vmatpush1.msra.mxu0 0.0
    %1931 = vmatprep.subr.mxu0 0.0
    %1932 = vmatpush1.msra.mxu0 0.0
    %1933 = vmatprep.subr.mxu0 0.0
    %1934 = vmatpush1.msra.mxu0 0.0
    %1935 = vmatprep.subr.mxu0 0.0
    %1936 = vmatpush1.msra.mxu0 0.0
    %1937 = vmatprep.subr.mxu0 0.0
    %1938 = vmatpush1.msra.mxu0 0.0
    %1939 = vmatprep.subr.mxu0 0.0
    %1940 = vmatpush1.msra.mxu0 0.0
    %1941 = vmatprep.subr.mxu0 0.0
    %1942 = vmatpush1.msra.mxu0 0.0
    %1943 = vmatprep.subr.mxu0 0.0
    %1944 = vmatpush1.msra.mxu0 0.0
    %1945 = vmatprep.subr.mxu0 0.0
    %1946 = vmatpush1.msra.mxu0 0.0
    %1947 = vmatprep.subr.mxu0 0.0
    %1948 = vmatpush1.msra.mxu0 0.0
    %1949 = vmatprep.subr.mxu0 0.0
    %1950 = vmatpush1.msra.mxu0 0.0
    %1951 = vmatprep.subr.mxu0 0.0
    %1952 = vmatpush1.msra.mxu0 0.0
    %1953 = vmatprep.subr.mxu0 0.0
    %1954 = vmatpush1.msra.mxu0 0.0
    %1955 = vmatprep.subr.mxu0 0.0
    %1956 = vmatpush1.msra.mxu0 0.0
    %1957 = vmatprep.subr.mxu0 0.0
    %1958 = vmatpush1.msra.mxu0 0.0
    %1959 = vmatprep.subr.mxu0 0.0
    %1960 = vmatpush1.msra.mxu0 0.0
    %1961 = vmatprep.subr.mxu0 0.0
    %1962 = vmatpush1.msra.mxu0 0.0
    %1963 = vmatprep.subr.mxu0 0.0
    %1964 = vmatpush1.msra.mxu0 0.0
    %1965 = vmatprep.subr.mxu0 0.0
    %1966 = vmatpush1.msra.mxu0 0.0
    %1967 = vmatprep.subr.mxu0 0.0
    %1968 = vmatpush1.msra.mxu0 0.0
    %1969 = vmatprep.subr.mxu0 0.0
    %1970 = vmatpush1.msra.mxu0 0.0
    %1971 = vmatprep.subr.mxu0 0.0
    %1972 = vmatpush1.msra.mxu0 0.0
    %1973 = vmatprep.mubr.f32.mxu0 0.0
    %1974 = vmatmul.mubr.f32.gmra.mrb[0].mxu0 %v1903
    %v1975 = vpop.f32.mrb[0].mxu0
    %v1976 = vadd.f32 %v346, %v1975
    %v1977 = vpop.f32.mrb[0].mxu0
    %1978 = vmatprep.mubr.f32.mxu0 0.0
    %1979 = vmatmul.mubr.f32.gmra.mrb[0].mxu0 %v1905
    %v1980 = vpop.f32.mrb[0].mxu0
    %v1981 = vadd.f32 %v346, %v1980
    %v1982 = vpop.f32.mrb[0].mxu0
    %1983 = vmatprep.mubr.f32.mxu0 0.0
    %1984 = vmatmul.mubr.f32.gmra.mrb[0].mxu0 %v1907
    %v1985 = vpop.f32.mrb[0].mxu0
    %v1986 = vadd.f32 %v346, %v1985
    %v1987 = vpop.f32.mrb[0].mxu0
    %1988 = vdwg.mxu0
    %v1989 = vadd.f32 %v1881, %v1976
    %v1990 = vadd.f32 %v1886, %v1981
    %v1991 = vadd.f32 %v1891, %v1986
    %v1992 = vxor.u32 %v1989, 2147483648
    %v1993 = vxor.u32 %v1990, 2147483648
    %v1994 = vxor.u32 %v1991, 2147483648
    %v1995 = vmul.f32 %v1992, 1.442695
    %v1996 = vpow.pop %v1995
    %v1997 = vmul.f32 %v1993, 1.442695
    %v1998 = vpow.pop %v1997
    %v1999 = vmul.f32 %v1994, 1.442695
    %v2000 = vpow.pop %v1999
    %v2001 = vadd.f32 %v1996, 1.0
    %v2002 = vadd.f32 %v1998, 1.0
    %v2003 = vadd.f32 %v2000, 1.0
    %v2004 = vrcp.pop %v2001
    %v2005 = vmul.f32 1.0, %v2004
    %v2006 = vrcp.pop %v2002
    %v2007 = vmul.f32 1.0, %v2006
    %v2008 = vrcp.pop %v2003
    %v2009 = vmul.f32 1.0, %v2008
    %2013 = vrot.lane.b32.xlu0 %v1976, 64
    %v2014 = vpop.permute.xlu0 %2013
    %2015 = vrot.lane.b32.xlu0 %v1981, 64
    %v2016 = vpop.permute.xlu0 %2015
    %2017 = vrot.lane.b32.xlu0 %v1986, 64
    %v2018 = vpop.permute.xlu0 %2017
    %v2022 = vmul.f32 %v2005, %v2014
    %v2023 = vmul.f32 %v2007, %v2016
    %v2024 = vmul.f32 %v2009, %v2018
    %2028 = vrot.lane.b32.xlu0 %v2022, 64
    %v2029 = vpop.permute.xlu0 %2028
    %2030 = vrot.lane.b32.xlu0 %v2023, 64
    %v2031 = vpop.permute.xlu0 %2030
    %2032 = vrot.lane.b32.xlu0 %v2024, 64
    %v2033 = vpop.permute.xlu0 %2032
    %v2037 = vadd.f32 %v1881, %v2029
    %v2038 = vadd.f32 %v1886, %v2031
    %v2039 = vadd.f32 %v1891, %v2033
    %v2040 = vtanh.pop %v2037
    %v2041 = vtanh.pop %v2038
    %v2042 = vtanh.pop %v2039
    %v2043 = vsub.f32 1.0, %v2005
    %v2044 = vsub.f32 1.0, %v2007
    %v2045 = vsub.f32 1.0, %v2009
    %2049 = vrot.lane.b32.xlu0 %v2040, 96
    %v2050 = vpop.permute.xlu0 %2049
    %2051 = vrot.lane.b32.xlu0 %v2041, 96
    %v2052 = vpop.permute.xlu0 %2051
    %2053 = vrot.lane.b32.xlu0 %v2042, 96
    %v2054 = vpop.permute.xlu0 %2053
    %v2058 = vmul.f32 %v2043, %v2050
    %v2059 = vmul.f32 %v2044, %v2052
    %v2060 = vmul.f32 %v2045, %v2054
    %v2061 = vmul.f32 %v2005, %v1634
    %v2062 = vmul.f32 %v2007, %v1635
    %v2063 = vmul.f32 %v2009, %v1636
    %v2064 = vadd.f32 %v2058, %v2061
    %v2065 = vadd.f32 %v2059, %v2062
    %v2066 = vadd.f32 %v2060, %v2063
    %v2067 = vld [vmem:[%s9] sm:$0x1]
    %v2068 = vld [vmem:[%s10] sm:$0x1]
    %v2072 = vsel %vm153, %v1803, 0.0
    %2073 = vadd.xlane.f32.xlu0 %v2072
    %v2074 = vpop.xlane.xlu0 %2073
    %v2075 = vsel %vm153, %v1805, 0.0
    %2076 = vadd.xlane.f32.xlu0 %v2075
    %v2077 = vpop.xlane.xlu0 %2076
    %v2078 = vsel %vm153, %v1807, 0.0
    %2079 = vadd.xlane.f32.xlu0 %v2078
    %v2080 = vpop.xlane.xlu0 %2079
    %v2081 = vrcp.pop 32.0
    %v2082 = vmul.f32 %v2074, %v2081
    %v2083 = vmul.f32 %v2077, %v2081
    %v2084 = vmul.f32 %v2080, %v2081
    %v2085 = vsub.f32 %v1796, %v2082
    %v2086 = vsub.f32 %v1797, %v2083
    %v2087 = vsub.f32 %v1798, %v2084
    %v2088 = vmul.f32 %v2085, %v2085
    %v2089 = vmul.f32 %v2086, %v2086
    %v2090 = vmul.f32 %v2087, %v2087
    %2094 = vrot.lane.b32.xlu0 %v2088, 96
    %v2095 = vpop.permute.xlu0 %2094
    %2096 = vrot.lane.b32.xlu0 %v2089, 96
    %v2097 = vpop.permute.xlu0 %2096
    %2098 = vrot.lane.b32.xlu0 %v2090, 96
    %v2099 = vpop.permute.xlu0 %2098
    %v2103 = vsel %vm153, %v2095, 0.0
    %2104 = vadd.xlane.f32.xlu0 %v2103
    %v2105 = vpop.xlane.xlu0 %2104
    %v2106 = vsel %vm153, %v2097, 0.0
    %2107 = vadd.xlane.f32.xlu0 %v2106
    %v2108 = vpop.xlane.xlu0 %2107
    %v2109 = vsel %vm153, %v2099, 0.0
    %2110 = vadd.xlane.f32.xlu0 %v2109
    %v2111 = vpop.xlane.xlu0 %2110
    %v2112 = vmul.f32 %v2105, %v2081
    %v2113 = vmul.f32 %v2108, %v2081
    %v2114 = vmul.f32 %v2111, %v2081
    %v2115 = vadd.f32 %v2112, 1e-05
    %v2116 = vadd.f32 %v2113, 1e-05
    %v2117 = vadd.f32 %v2114, 1e-05
    %v2118 = vrsqrt.pop %v2115
    %v2119 = vrsqrt.pop %v2116
    %v2120 = vrsqrt.pop %v2117
    %v2121 = vmul.f32 %v2085, %v2118
    %v2122 = vmul.f32 %v2086, %v2119
    %v2123 = vmul.f32 %v2087, %v2120
    %v2125 = vlaneseq
    %v2126 = vshrl.u32 %v2125, 7
    %v2127 = vsub.s32 0, %v2126
    %v2128 = vrot.slane %v2067, %v2127
    %2129 = vrot.lane.b32.xlu0 %v2128, 32
    %v2130 = vpop.permute.xlu0 %2129
    %v2132 = vmul.f32 %v2121, %v2130
    %v2133 = vmul.f32 %v2122, %v2130
    %v2134 = vmul.f32 %v2123, %v2130
    %v2136 = vlaneseq
    %v2137 = vshrl.u32 %v2136, 7
    %v2138 = vsub.s32 0, %v2137
    %v2139 = vrot.slane %v2068, %v2138
    %2140 = vrot.lane.b32.xlu0 %v2139, 32
    %v2141 = vpop.permute.xlu0 %2140
    %v2143 = vadd.f32 %v2132, %v2141
    %v2144 = vadd.f32 %v2133, %v2141
    %v2145 = vadd.f32 %v2134, %v2141
    %v2146 = vld [vmem:[%s11] sm:$0xff]
    %v2147 = vld [vmem:[%s11 + $0x8] sm:$0xff]
    %v2148 = vld [vmem:[%s11 + $0x10] sm:$0xff]
    %v2149 = vld [vmem:[%s11 + $0x18] sm:$0xff]
    %2153 = vrot.lane.b32.xlu0 %v2064, 96
    %v2154 = vpop.permute.xlu0 %2153
    %2155 = vrot.lane.b32.xlu0 %v2065, 96
    %v2156 = vpop.permute.xlu0 %2155
    %2157 = vrot.lane.b32.xlu0 %v2066, 96
    %v2158 = vpop.permute.xlu0 %2157
    %v2162 = vsel %vm153, %v2154, 0.0
    %2163 = vadd.xlane.f32.xlu0 %v2162
    %v2164 = vpop.xlane.xlu0 %2163
    %v2165 = vsel %vm153, %v2156, 0.0
    %2166 = vadd.xlane.f32.xlu0 %v2165
    %v2167 = vpop.xlane.xlu0 %2166
    %v2168 = vsel %vm153, %v2158, 0.0
    %2169 = vadd.xlane.f32.xlu0 %v2168
    %v2170 = vpop.xlane.xlu0 %2169
    %v2171 = vmul.f32 %v2164, %v2081
    %v2172 = vmul.f32 %v2167, %v2081
    %v2173 = vmul.f32 %v2170, %v2081
    %v2174 = vsub.f32 %v2064, %v2171
    %v2175 = vsub.f32 %v2065, %v2172
    %v2176 = vsub.f32 %v2066, %v2173
    %v2177 = vmul.f32 %v2174, %v2174
    %v2178 = vmul.f32 %v2175, %v2175
    %v2179 = vmul.f32 %v2176, %v2176
    %2183 = vrot.lane.b32.xlu0 %v2177, 96
    %v2184 = vpop.permute.xlu0 %2183
    %2185 = vrot.lane.b32.xlu0 %v2178, 96
    %v2186 = vpop.permute.xlu0 %2185
    %2187 = vrot.lane.b32.xlu0 %v2179, 96
    %v2188 = vpop.permute.xlu0 %2187
    %v2192 = vsel %vm153, %v2184, 0.0
    %2193 = vadd.xlane.f32.xlu0 %v2192
    %v2194 = vpop.xlane.xlu0 %2193
    %v2195 = vsel %vm153, %v2186, 0.0
    %2196 = vadd.xlane.f32.xlu0 %v2195
    %v2197 = vpop.xlane.xlu0 %2196
    %v2198 = vsel %vm153, %v2188, 0.0
    %2199 = vadd.xlane.f32.xlu0 %v2198
    %v2200 = vpop.xlane.xlu0 %2199
    %v2201 = vmul.f32 %v2194, %v2081
    %v2202 = vmul.f32 %v2197, %v2081
    %v2203 = vmul.f32 %v2200, %v2081
    %v2204 = vadd.f32 %v2201, 1e-05
    %v2205 = vadd.f32 %v2202, 1e-05
    %v2206 = vadd.f32 %v2203, 1e-05
    %v2207 = vrsqrt.pop %v2204
    %v2208 = vrsqrt.pop %v2205
    %v2209 = vrsqrt.pop %v2206
    %v2210 = vmul.f32 %v2174, %v2207
    %v2211 = vmul.f32 %v2175, %v2208
    %v2212 = vmul.f32 %v2176, %v2209
    %v2213 = vmul.f32 %v2210, %v2130
    %v2214 = vmul.f32 %v2211, %v2130
    %v2215 = vmul.f32 %v2212, %v2130
    %v2216 = vadd.f32 %v2213, %v2141
    %v2217 = vadd.f32 %v2214, %v2141
    %v2218 = vadd.f32 %v2215, %v2141
    %v2219 = vld [vmem:[#allocation12] sm:$0xff]
    %v2220 = vld [vmem:[#allocation12 + $0x8] sm:$0xff]
    %v2221 = vld [vmem:[#allocation12 + $0x10] sm:$0xff]
    %v2222 = vld [vmem:[#allocation12 + $0x18] sm:$0xff]
    %2226 = vrot.lane.b32.xlu0 %v2216, 96
    %v2227 = vpop.permute.xlu0 %2226
    %2228 = vrot.lane.b32.xlu0 %v2217, 96
    %v2229 = vpop.permute.xlu0 %2228
    %2230 = vrot.lane.b32.xlu0 %v2218, 96
    %v2231 = vpop.permute.xlu0 %2230
    %v2232 = vsel %vm153, %v2227, 0
    %v2234 = vsel %vm153, %v2229, 0
    %v2236 = vsel %vm153, %v2231, 0
    %2238 = vmatprep.subr.mxu0 0.0
    %2239 = vmatpush1.msra.mxu0 %v2219
    %2240 = vmatprep.subr.mxu0 0.0
    %2241 = vmatpush1.msra.mxu0 %v2220
    %2242 = vmatprep.subr.mxu0 0.0
    %2243 = vmatpush1.msra.mxu0 %v2221
    %2244 = vmatprep.subr.mxu0 0.0
    %2245 = vmatpush1.msra.mxu0 %v2222
    %2246 = vmatprep.subr.mxu0 0.0
    %2247 = vmatpush1.msra.mxu0 0.0
    %2248 = vmatprep.subr.mxu0 0.0
    %2249 = vmatpush1.msra.mxu0 0.0
    %2250 = vmatprep.subr.mxu0 0.0
    %2251 = vmatpush1.msra.mxu0 0.0
    %2252 = vmatprep.subr.mxu0 0.0
    %2253 = vmatpush1.msra.mxu0 0.0
    %2254 = vmatprep.subr.mxu0 0.0
    %2255 = vmatpush1.msra.mxu0 0.0
    %2256 = vmatprep.subr.mxu0 0.0
    %2257 = vmatpush1.msra.mxu0 0.0
    %2258 = vmatprep.subr.mxu0 0.0
    %2259 = vmatpush1.msra.mxu0 0.0
    %2260 = vmatprep.subr.mxu0 0.0
    %2261 = vmatpush1.msra.mxu0 0.0
    %2262 = vmatprep.subr.mxu0 0.0
    %2263 = vmatpush1.msra.mxu0 0.0
    %2264 = vmatprep.subr.mxu0 0.0
    %2265 = vmatpush1.msra.mxu0 0.0
    %2266 = vmatprep.subr.mxu0 0.0
    %2267 = vmatpush1.msra.mxu0 0.0
    %2268 = vmatprep.subr.mxu0 0.0
    %2269 = vmatpush1.msra.mxu0 0.0
    %2270 = vmatprep.subr.mxu0 0.0
    %2271 = vmatpush1.msra.mxu0 0.0
    %2272 = vmatprep.subr.mxu0 0.0
    %2273 = vmatpush1.msra.mxu0 0.0
    %2274 = vmatprep.subr.mxu0 0.0
    %2275 = vmatpush1.msra.mxu0 0.0
    %2276 = vmatprep.subr.mxu0 0.0
    %2277 = vmatpush1.msra.mxu0 0.0
    %2278 = vmatprep.subr.mxu0 0.0
    %2279 = vmatpush1.msra.mxu0 0.0
    %2280 = vmatprep.subr.mxu0 0.0
    %2281 = vmatpush1.msra.mxu0 0.0
    %2282 = vmatprep.subr.mxu0 0.0
    %2283 = vmatpush1.msra.mxu0 0.0
    %2284 = vmatprep.subr.mxu0 0.0
    %2285 = vmatpush1.msra.mxu0 0.0
    %2286 = vmatprep.subr.mxu0 0.0
    %2287 = vmatpush1.msra.mxu0 0.0
    %2288 = vmatprep.subr.mxu0 0.0
    %2289 = vmatpush1.msra.mxu0 0.0
    %2290 = vmatprep.subr.mxu0 0.0
    %2291 = vmatpush1.msra.mxu0 0.0
    %2292 = vmatprep.subr.mxu0 0.0
    %2293 = vmatpush1.msra.mxu0 0.0
    %2294 = vmatprep.subr.mxu0 0.0
    %2295 = vmatpush1.msra.mxu0 0.0
    %2296 = vmatprep.subr.mxu0 0.0
    %2297 = vmatpush1.msra.mxu0 0.0
    %2298 = vmatprep.subr.mxu0 0.0
    %2299 = vmatpush1.msra.mxu0 0.0
    %2300 = vmatprep.subr.mxu0 0.0
    %2301 = vmatpush1.msra.mxu0 0.0
    %2302 = vmatprep.mubr.f32.mxu0 0.0
    %2303 = vmatmul.mubr.f32.gmra.mrb[0].mxu0 %v2232
    %v2304 = vpop.f32.mrb[0].mxu0
    %v2305 = vadd.f32 0.0, %v2304
    %v2306 = vpop.f32.mrb[0].mxu0
    %2307 = vmatprep.mubr.f32.mxu0 0.0
    %2308 = vmatmul.mubr.f32.gmra.mrb[0].mxu0 %v2234
    %v2309 = vpop.f32.mrb[0].mxu0
    %v2310 = vadd.f32 0.0, %v2309
    %v2311 = vpop.f32.mrb[0].mxu0
    %2312 = vmatprep.mubr.f32.mxu0 0.0
    %2313 = vmatmul.mubr.f32.gmra.mrb[0].mxu0 %v2236
    %v2314 = vpop.f32.mrb[0].mxu0
    %v2315 = vadd.f32 0.0, %v2314
    %v2316 = vpop.f32.mrb[0].mxu0
    %2317 = vdwg.mxu0
    %2321 = vrot.lane.b32.xlu0 %v2143, 96
    %v2322 = vpop.permute.xlu0 %2321
    %2323 = vrot.lane.b32.xlu0 %v2144, 96
    %v2324 = vpop.permute.xlu0 %2323
    %2325 = vrot.lane.b32.xlu0 %v2145, 96
    %v2326 = vpop.permute.xlu0 %2325
    %v2327 = vsel %vm153, %v2322, 0
    %v2329 = vsel %vm153, %v2324, 0
    %v2331 = vsel %vm153, %v2326, 0
    %2333 = vmatprep.subr.mxu0 0.0
    %2334 = vmatpush1.msra.mxu0 %v2146
    %2335 = vmatprep.subr.mxu0 0.0
    %2336 = vmatpush1.msra.mxu0 %v2147
    %2337 = vmatprep.subr.mxu0 0.0
    %2338 = vmatpush1.msra.mxu0 %v2148
    %2339 = vmatprep.subr.mxu0 0.0
    %2340 = vmatpush1.msra.mxu0 %v2149
    %2341 = vmatprep.subr.mxu0 0.0
    %2342 = vmatpush1.msra.mxu0 0.0
    %2343 = vmatprep.subr.mxu0 0.0
    %2344 = vmatpush1.msra.mxu0 0.0
    %2345 = vmatprep.subr.mxu0 0.0
    %2346 = vmatpush1.msra.mxu0 0.0
    %2347 = vmatprep.subr.mxu0 0.0
    %2348 = vmatpush1.msra.mxu0 0.0
    %2349 = vmatprep.subr.mxu0 0.0
    %2350 = vmatpush1.msra.mxu0 0.0
    %2351 = vmatprep.subr.mxu0 0.0
    %2352 = vmatpush1.msra.mxu0 0.0
    %2353 = vmatprep.subr.mxu0 0.0
    %2354 = vmatpush1.msra.mxu0 0.0
    %2355 = vmatprep.subr.mxu0 0.0
    %2356 = vmatpush1.msra.mxu0 0.0
    %2357 = vmatprep.subr.mxu0 0.0
    %2358 = vmatpush1.msra.mxu0 0.0
    %2359 = vmatprep.subr.mxu0 0.0
    %2360 = vmatpush1.msra.mxu0 0.0
    %2361 = vmatprep.subr.mxu0 0.0
    %2362 = vmatpush1.msra.mxu0 0.0
    %2363 = vmatprep.subr.mxu0 0.0
    %2364 = vmatpush1.msra.mxu0 0.0
    %2365 = vmatprep.subr.mxu0 0.0
    %2366 = vmatpush1.msra.mxu0 0.0
    %2367 = vmatprep.subr.mxu0 0.0
    %2368 = vmatpush1.msra.mxu0 0.0
    %2369 = vmatprep.subr.mxu0 0.0
    %2370 = vmatpush1.msra.mxu0 0.0
    %2371 = vmatprep.subr.mxu0 0.0
    %2372 = vmatpush1.msra.mxu0 0.0
    %2373 = vmatprep.subr.mxu0 0.0
    %2374 = vmatpush1.msra.mxu0 0.0
    %2375 = vmatprep.subr.mxu0 0.0
    %2376 = vmatpush1.msra.mxu0 0.0
    %2377 = vmatprep.subr.mxu0 0.0
    %2378 = vmatpush1.msra.mxu0 0.0
    %2379 = vmatprep.subr.mxu0 0.0
    %2380 = vmatpush1.msra.mxu0 0.0
    %2381 = vmatprep.subr.mxu0 0.0
    %2382 = vmatpush1.msra.mxu0 0.0
    %2383 = vmatprep.subr.mxu0 0.0
    %2384 = vmatpush1.msra.mxu0 0.0
    %2385 = vmatprep.subr.mxu0 0.0
    %2386 = vmatpush1.msra.mxu0 0.0
    %2387 = vmatprep.subr.mxu0 0.0
    %2388 = vmatpush1.msra.mxu0 0.0
    %2389 = vmatprep.subr.mxu0 0.0
    %2390 = vmatpush1.msra.mxu0 0.0
    %2391 = vmatprep.subr.mxu0 0.0
    %2392 = vmatpush1.msra.mxu0 0.0
    %2393 = vmatprep.subr.mxu0 0.0
    %2394 = vmatpush1.msra.mxu0 0.0
    %2395 = vmatprep.subr.mxu0 0.0
    %2396 = vmatpush1.msra.mxu0 0.0
    %2397 = vmatprep.mubr.f32.mxu0 0.0
    %2398 = vmatmul.mubr.f32.gmra.mrb[0].mxu0 %v2327
    %v2399 = vpop.f32.mrb[0].mxu0
    %v2400 = vadd.f32 %v2305, %v2399
    %v2401 = vpop.f32.mrb[0].mxu0
    %2402 = vmatprep.mubr.f32.mxu0 0.0
    %2403 = vmatmul.mubr.f32.gmra.mrb[0].mxu0 %v2329
    %v2404 = vpop.f32.mrb[0].mxu0
    %v2405 = vadd.f32 %v2310, %v2404
    %v2406 = vpop.f32.mrb[0].mxu0
    %2407 = vmatprep.mubr.f32.mxu0 0.0
    %2408 = vmatmul.mubr.f32.gmra.mrb[0].mxu0 %v2331
    %v2409 = vpop.f32.mrb[0].mxu0
    %v2410 = vadd.f32 %v2315, %v2409
    %v2411 = vpop.f32.mrb[0].mxu0
    %2412 = vdwg.mxu0
    %v2413 = vld [vmem:[%s13] sm:$0x1]
    %v2415 = vlaneseq
    %v2416 = vshrl.u32 %v2415, 7
    %v2417 = vsub.s32 0, %v2416
    %v2418 = vrot.slane %v2413, %v2417
    %v2420 = vadd.f32 %v2400, %v2418
    %v2421 = vadd.f32 %v2405, %v2418
    %v2422 = vadd.f32 %v2410, %v2418
    %2423 = vst [vmem:[#allocation14] sm:$0xff] %v2420
    %2424 = vst [vmem:[#allocation14 + $0x8] sm:$0xff] %v2421
    %2425 = vst [vmem:[#allocation14 + $0x10] sm:$0xff] %v2422
    // Predicated region
    $region82: #{tpu_custom_call.1} parent=1 // pred_check
      _
    $region83: #{tpu_custom_call.1} parent=1 // pred_check_branch
      %2427 = sbr.rel (0) target = $region85
    $region84: #{tpu_custom_call.1} parent=1 // pred_region
      %s2429 = ssub.s32 384, 384
      %2430 = vsyncadd [#allocation5], %s2429
      %s2431 = sshll.u32 [#allocation14], 4
      %s2432 = int_to_ptr.vmem [resolvable:$true] %s2431
      %2437 = dma.vmem_to_hbm [thread:$0]  %s2432, 384, %s14, [#allocation5], 128, 128, 8
    $region85: #{tpu_custom_call.1} parent=1 // pred_fallthru
      _
    // Predicated region
    $region86: #{tpu_custom_call.1} parent=1 // pred_check
      _
    $region87: #{tpu_custom_call.1} parent=1 // pred_check_branch
      %2439 = sbr.rel (0) target = $region89
    $region88: #{tpu_custom_call.1} parent=1 // pred_region
      %2440 = dma.done [#allocation5], 384
    $region89: #{tpu_custom_call.1} parent=1 // pred_fallthru
      _
    %2441 = vsyncpa [#allocation4], 1
    %2442 = vsyncpa [#allocation7], 1
    %2443 = vsyncpa [#allocation10], 1
    %2444 = vsyncpa [#allocation13], 1
    %2445 = vsyncpa [#allocation5], 1

</llo_original>
